<compile_context>
chip_gen: v7x
topology: tpu7x:2x2x1
jax: 0.10.0
libtpu: 0.0.40
codegen_flags: <defaults>
</compile_context>

<pallas_src>
import numpy as np
import jax
import jax.numpy as jnp
from jax.experimental import pallas as pl
from jax.experimental.pallas import tpu as pltpu

# ----------------------------- config ---------------------------------------
N_LABELS = 12
N_MAPS = 8
N_LAYERS = 4
B, H, W = 2, 16, 16
BN_EPS = 1e-5

C = N_MAPS            # 8 channels
WC = W * C            # 128  -> one full vreg lane width
ROWS = B * H          # 32   -> activation rows (b*H + h)
KTAPS = 3 * WC        # 384  -> K dim of the fused per-layer conv dot
N_SPATIAL = H * W     # 256
N_BATCH = B * H * W   # 512  (BatchNorm reduction size)


def _full_spec(shape):
  nd = len(shape)
  return pl.BlockSpec(shape, lambda i, nd=nd: (0,) * nd)


# ----------------------------- fused kernel ----------------------------------
def _fused_forward_kernel(x_ref, w_ref, rep_ref, gath_ref, mt_ref, mb_ref,
                          dw_ref, db_ref, probs_ref, emb_ref):
  f32 = jnp.float32
  bf16 = jnp.bfloat16

  def dot_f32(a, b):
    return jax.lax.dot_general(a, b, (((1,), (0,)), ((), ())),
                               preferred_element_type=f32)

  mask_top = mt_ref[...]      # (32,1): zero where the kh=-1 tap crosses an image top
  mask_bot = mb_ref[...]      # (32,1): zero where the kh=+1 tap crosses an image bottom
  chan_rep = rep_ref[...]     # (128,128): lane-group (stride-8) replication matrix

  def conv(h, layer):
    # 3x3 'same' conv as ONE MXU dot: the H taps are XLU sublane rolls + masks,
    # the kw taps + W zero padding are baked into the banded (384,128) weight.
    top = pltpu.roll(h, 1, 0) * mask_top          # row r -> h[r-1], 0 at image top
    bot = pltpu.roll(h, ROWS - 1, 0) * mask_bot   # row r -> h[r+1], 0 at image bottom
    a = jnp.concatenate([top, h, bot], axis=1).astype(bf16)   # (32, 384)
    return dot_f32(a, w_ref[layer])                            # (32, 128) f32 acc

  inv_n = 1.0 / N_BATCH

  # Layer 0 (Cin=1 lives at lane 'channel 0' of the lane-dense layout).
  h = jnp.maximum(conv(x_ref[...], 0), 0.0)
  old_x = h

  for layer in range(1, N_LAYERS + 1):
    y = jnp.maximum(conv(h, layer), 0.0)          # conv + ReLU
    if layer % 2 == 0:
      y = y + old_x                               # residual add (pre-BN), res8 ordering
      old_x = y
    # BatchNorm2d(affine=False), training-mode batch stats over (B,H,W):
    # a single MXU dot reduces both sum(y) and sum(y^2) across the 16 lane
    # groups of each channel; var = E[y^2] - mean^2.
    s1 = jnp.sum(y, axis=0, keepdims=True)                       # (1,128)
    s2 = jnp.sum(y * y, axis=0, keepdims=True)                   # (1,128)
    red = dot_f32(jnp.concatenate([s1, s2], axis=0), chan_rep)   # (2,128)
    mean = red[0:1, :] * inv_n
    var = red[1:2, :] * inv_n - mean * mean
    h = (y - mean) * jax.lax.rsqrt(var + BN_EPS)

  # Head: global spatial mean -> Linear -> Softmax (all f32).
  row_sum = jnp.sum(h.reshape(B, H, WC), axis=1)                 # (B, 128)
  emb = dot_f32(row_sum, gath_ref[...]) * (1.0 / N_SPATIAL)      # (B, 8)
  logits = dot_f32(emb, dw_ref[...]) + db_ref[...]
  m = jnp.max(logits, axis=-1, keepdims=True)
  e = jnp.exp(logits - m)
  probs_ref[...] = e / jnp.sum(e, axis=-1, keepdims=True)
  emb_ref[...] = emb


# ----------------------------- wrapper ---------------------------------------
@jax.jit
def speech_res_model_forward(x, packed):
  """x: (B, H, W) float32. Returns (softmax probs (B, n_labels), embedding (B, n_maps))."""
  # Lane-dense input packing (layout plumbing only): (B,H,W) -> (B*H, W*C)
  # with the single input channel at lane w*C + 0.
  x2 = jnp.pad(x.reshape(ROWS, W, 1).astype(jnp.float32),
               ((0, 0), (0, 0), (0, C - 1))).reshape(ROWS, WC)
  inputs = (x2, packed["w"], packed["chan_rep"], packed["chan_gather"],
            packed["mask_top"], packed["mask_bot"],
            packed["dense_w"], packed["dense_b"])
  return pl.pallas_call(
      _fused_forward_kernel,
      out_shape=(jax.ShapeDtypeStruct((B, N_LABELS), jnp.float32),
                 jax.ShapeDtypeStruct((B, N_MAPS), jnp.float32)),
      grid=(1,),
      in_specs=[_full_spec(a.shape) for a in inputs],
      out_specs=[_full_spec((B, N_LABELS)), _full_spec((B, N_MAPS))],
      compiler_params=pltpu.CompilerParams(
          dimension_semantics=("arbitrary",)),
      cost_estimate=pl.CostEstimate(flops=16_000_000, transcendentals=600,
                                    bytes_accessed=700_000),
  )(*inputs)


# ----------------------------- weight packing (once, numpy) ------------------
def _band_conv_weight(w):
  """(3,3,C,C) -> (3*W*C, W*C): for each kh tap a banded matrix
  M[wi*C+ci, wo*C+co] = w[kh, wi-wo+1, ci, co] (realizes the kw taps and the
  horizontal zero padding), kh blocks stacked along rows in [top, mid, bot]
  order to match the kernel's K-concat of the rolled activations."""
  m = np.zeros((3, W * C, W * C), np.float32)
  for kh in range(3):
    for wo in range(W):
      for kw in range(3):
        wi = wo + kw - 1
        if 0 <= wi < W:
          m[kh, wi * C:(wi + 1) * C, wo * C:(wo + 1) * C] = w[kh, kw]
  return m.reshape(3 * W * C, W * C)


def pack_params(params):
  """One-time repack of conv weights + constant matrices (off the hot path)."""
  # Embed the (3,3,1,8) layer-0 weight into the C-channel lane layout
  # (input channels 1..7 are zero) so every layer shares one code path.
  w0 = np.zeros((3, 3, C, C), np.float32)
  w0[:, :, 0, :] = np.asarray(params["conv0"], np.float32)[:, :, 0, :]
  mats = [_band_conv_weight(w0)]
  for i in range(1, N_LAYERS + 1):
    mats.append(_band_conv_weight(np.asarray(params[f"conv{i}"], np.float32)))

  idx = np.arange(WC)
  chan_rep = (idx[:, None] % C == idx[None, :] % C).astype(np.float32)       # (128,128)
  chan_gather = (idx[:, None] % C == np.arange(C)[None, :]).astype(np.float32)  # (128,8)
  r = np.arange(ROWS)
  mask_top = (r % H != 0).astype(np.float32)[:, None]        # (32,1): rows 0,16 -> 0
  mask_bot = (r % H != H - 1).astype(np.float32)[:, None]    # (32,1): rows 15,31 -> 0

  return {"w": jnp.asarray(np.stack(mats), dtype=jnp.bfloat16),   # (5, 384, 128) bf16
          "chan_rep": jnp.asarray(chan_rep),
          "chan_gather": jnp.asarray(chan_gather),
          "mask_top": jnp.asarray(mask_top),
          "mask_bot": jnp.asarray(mask_bot),
          "dense_w": params["dense_w"],     # (8, 12) f32
          "dense_b": params["dense_b"]}     # (1, 12) f32


# ----------------------------- pure-JAX reference (raw weights) --------------
def _ref_forward(x, params):
  def conv(inp, w):
    return jax.lax.conv_general_dilated(
        inp, w, window_strides=(1, 1), padding="SAME",
        dimension_numbers=("NHWC", "HWIO", "NHWC"))

  def bn(v):
    mean = jnp.mean(v, axis=(0, 1, 2), keepdims=True)
    var = jnp.mean(jnp.square(v - mean), axis=(0, 1, 2), keepdims=True)
    return (v - mean) * jax.lax.rsqrt(var + BN_EPS)

  h = x[..., None]
  y = jax.nn.relu(conv(h, params["conv0"]))
  old_x = y
  h = y
  for i in range(1, N_LAYERS + 1):
    y = jax.nn.relu(conv(h, params[f"conv{i}"]))
    if i % 2 == 0:
      y = y + old_x
      old_x = y
    h = bn(y)
  emb = jnp.mean(h.reshape(h.shape[0], -1, h.shape[-1]), axis=1)
  logits = emb @ params["dense_w"] + params["dense_b"]
  return jax.nn.softmax(logits, axis=-1), emb


# ----------------------------- main -------------------------------------------
def _init_params(key):
  params = {}
  key, k0 = jax.random.split(key)
  params["conv0"] = 0.3 * jax.random.normal(k0, (3, 3, 1, N_MAPS), jnp.float32)
  for i in range(1, N_LAYERS + 1):
    key, ki = jax.random.split(key)
    params[f"conv{i}"] = 0.1 * jax.random.normal(ki, (3, 3, N_MAPS, N_MAPS), jnp.float32)
  key, kw, kb = jax.random.split(key, 3)
  params["dense_w"] = 0.2 * jax.random.normal(kw, (N_MAPS, N_LABELS), jnp.float32)
  params["dense_b"] = 0.1 * jax.random.normal(kb, (1, N_LABELS), jnp.float32)
  return params


if __name__ == "__main__":
  key = jax.random.PRNGKey(0)
  key, kx = jax.random.split(key)
  x = jax.random.normal(kx, (B, H, W), jnp.float32)
  params = _init_params(key)
  packed = pack_params(params)           # numpy, once — not on the per-call path

  probs, emb = speech_res_model_forward(x, packed)
  probs = jax.block_until_ready(probs)
  emb = jax.block_until_ready(emb)

  # sanity: shapes, softmax normalization, and pure-JAX f32 reference match.
  assert probs.shape == (B, N_LABELS) and emb.shape == (B, N_MAPS)
  np.testing.assert_allclose(np.asarray(jnp.sum(probs, axis=-1)), 1.0, atol=1e-5)
  ref_probs, ref_emb = _ref_forward(x, params)
  # Tolerances account for bf16 MXU operands (f32 accumulation) in the conv dots.
  np.testing.assert_allclose(np.asarray(probs), np.asarray(ref_probs), atol=2e-3, rtol=1e-2)
  np.testing.assert_allclose(np.asarray(emb), np.asarray(ref_emb), atol=1e-2, rtol=2e-2)

  print("KERNEL_OK")
</pallas_src>

<mosaic_0001>
module attributes {stable_mosaic.version = 11 : i64} {
  func.func @_fused_forward_kernel(%arg0: i32, %arg1: memref<32x128xf32, #tpu.memory_space<vmem>>, %arg2: memref<5x384x128xbf16, #tpu.memory_space<vmem>>, %arg3: memref<128x128xf32, #tpu.memory_space<vmem>>, %arg4: memref<128x8xf32, #tpu.memory_space<vmem>>, %arg5: memref<32x1xf32, #tpu.memory_space<vmem>>, %arg6: memref<32x1xf32, #tpu.memory_space<vmem>>, %arg7: memref<8x12xf32, #tpu.memory_space<vmem>>, %arg8: memref<1x12xf32, #tpu.memory_space<vmem>>, %arg9: memref<2x12xf32, #tpu.memory_space<vmem>>, %arg10: memref<2x8xf32, #tpu.memory_space<vmem>>) attributes {dimension_semantics = [#tpu.dimension_semantics<arbitrary>], iteration_bounds = array<i64: 1>, scalar_prefetch = 0 : i64, scratch_operands = 0 : i64, tpu.core_type = #tpu.core_type<tc>, window_params = [{pipeline_mode = #tpu.pipeline_mode<synchronous>, transform_indices = @transform_0, window_bounds = array<i64: 32, 128>}, {pipeline_mode = #tpu.pipeline_mode<synchronous>, transform_indices = @transform_1, window_bounds = array<i64: 5, 384, 128>}, {pipeline_mode = #tpu.pipeline_mode<synchronous>, transform_indices = @transform_2, window_bounds = array<i64: 128, 128>}, {pipeline_mode = #tpu.pipeline_mode<synchronous>, transform_indices = @transform_3, window_bounds = array<i64: 128, 8>}, {pipeline_mode = #tpu.pipeline_mode<synchronous>, transform_indices = @transform_4, window_bounds = array<i64: 32, 1>}, {pipeline_mode = #tpu.pipeline_mode<synchronous>, transform_indices = @transform_5, window_bounds = array<i64: 32, 1>}, {pipeline_mode = #tpu.pipeline_mode<synchronous>, transform_indices = @transform_6, window_bounds = array<i64: 8, 12>}, {pipeline_mode = #tpu.pipeline_mode<synchronous>, transform_indices = @transform_7, window_bounds = array<i64: 1, 12>}, {pipeline_mode = #tpu.pipeline_mode<synchronous>, transform_indices = @transform_8, window_bounds = array<i64: 2, 12>}, {pipeline_mode = #tpu.pipeline_mode<synchronous>, transform_indices = @transform_9, window_bounds = array<i64: 2, 8>}]} {
    %c0 = arith.constant 0 : index
    %c0_0 = arith.constant 0 : index
    %0 = vector.load %arg5[%c0, %c0_0] : memref<32x1xf32, #tpu.memory_space<vmem>>, vector<32x1xf32>
    %c0_1 = arith.constant 0 : index
    %c0_2 = arith.constant 0 : index
    %1 = vector.load %arg6[%c0_1, %c0_2] : memref<32x1xf32, #tpu.memory_space<vmem>>, vector<32x1xf32>
    %c0_3 = arith.constant 0 : index
    %c0_4 = arith.constant 0 : index
    %2 = vector.load %arg3[%c0_3, %c0_4] : memref<128x128xf32, #tpu.memory_space<vmem>>, vector<128x128xf32>
    %c0_5 = arith.constant 0 : index
    %c0_6 = arith.constant 0 : index
    %3 = vector.load %arg1[%c0_5, %c0_6] : memref<32x128xf32, #tpu.memory_space<vmem>>, vector<32x128xf32>
    %c1_i32 = arith.constant 1 : i32
    %4 = tpu.dynamic_rotate %3 by %c1_i32 dim 0 : vector<32x128xf32>, i32 -> vector<32x128xf32>
    %5 = vector.broadcast %0 : vector<32x1xf32> to vector<32x128xf32>
    %6 = arith.mulf %4, %5 : vector<32x128xf32>
    %c31_i32 = arith.constant 31 : i32
    %7 = tpu.dynamic_rotate %3 by %c31_i32 dim 0 : vector<32x128xf32>, i32 -> vector<32x128xf32>
    %8 = vector.broadcast %1 : vector<32x1xf32> to vector<32x128xf32>
    %9 = arith.mulf %7, %8 : vector<32x128xf32>
    %10 = tpu.concatenate %6, %3, %9 in 1 : vector<32x128xf32>, vector<32x128xf32>, vector<32x128xf32> -> vector<32x384xf32>
    %11 = arith.truncf %10 : vector<32x384xf32> to vector<32x384xbf16>
    %c0_7 = arith.constant 0 : index
    %c0_8 = arith.constant 0 : index
    %c0_9 = arith.constant 0 : index
    %12 = vector.load %arg2[%c0_7, %c0_8, %c0_9] : memref<5x384x128xbf16, #tpu.memory_space<vmem>>, vector<1x384x128xbf16>
    %13 = vector.shape_cast %12 : vector<1x384x128xbf16> to vector<384x128xbf16>
    %cst = arith.constant dense<0.000000e+00> : vector<32x128xf32>
    %14 = tpu.matmul %11, %13, %cst {dimension_numbers = #tpu.dot_dimension_numbers<[1], [0], [0], [1], [0, 0, 1, 1], [], []>} : vector<32x384xbf16>, vector<384x128xbf16>, vector<32x128xf32> -> vector<32x128xf32>
    %cst_10 = arith.constant 0.000000e+00 : f32
    %15 = vector.broadcast %cst_10 : f32 to vector<32x128xf32>
    %16 = arith.maximumf %14, %15 : vector<32x128xf32>
    %c1_i32_11 = arith.constant 1 : i32
    %17 = tpu.dynamic_rotate %16 by %c1_i32_11 dim 0 : vector<32x128xf32>, i32 -> vector<32x128xf32>
    %18 = vector.broadcast %0 : vector<32x1xf32> to vector<32x128xf32>
    %19 = arith.mulf %17, %18 : vector<32x128xf32>
    %c31_i32_12 = arith.constant 31 : i32
    %20 = tpu.dynamic_rotate %16 by %c31_i32_12 dim 0 : vector<32x128xf32>, i32 -> vector<32x128xf32>
    %21 = vector.broadcast %1 : vector<32x1xf32> to vector<32x128xf32>
    %22 = arith.mulf %20, %21 : vector<32x128xf32>
    %23 = tpu.concatenate %19, %16, %22 in 1 : vector<32x128xf32>, vector<32x128xf32>, vector<32x128xf32> -> vector<32x384xf32>
    %24 = arith.truncf %23 : vector<32x384xf32> to vector<32x384xbf16>
    %c1 = arith.constant 1 : index
    %c0_13 = arith.constant 0 : index
    %c0_14 = arith.constant 0 : index
    %25 = vector.load %arg2[%c1, %c0_13, %c0_14] : memref<5x384x128xbf16, #tpu.memory_space<vmem>>, vector<1x384x128xbf16>
    %26 = vector.shape_cast %25 : vector<1x384x128xbf16> to vector<384x128xbf16>
    %cst_15 = arith.constant dense<0.000000e+00> : vector<32x128xf32>
    %27 = tpu.matmul %24, %26, %cst_15 {dimension_numbers = #tpu.dot_dimension_numbers<[1], [0], [0], [1], [0, 0, 1, 1], [], []>} : vector<32x384xbf16>, vector<384x128xbf16>, vector<32x128xf32> -> vector<32x128xf32>
    %cst_16 = arith.constant 0.000000e+00 : f32
    %28 = vector.broadcast %cst_16 : f32 to vector<32x128xf32>
    %29 = arith.maximumf %27, %28 : vector<32x128xf32>
    %cst_17 = arith.constant dense<0.000000e+00> : vector<128xf32>
    %30 = vector.multi_reduction <add>, %29, %cst_17 [0] : vector<32x128xf32> to vector<128xf32>
    %31 = vector.shape_cast %30 : vector<128xf32> to vector<1x128xf32>
    %32 = arith.mulf %29, %29 : vector<32x128xf32>
    %cst_18 = arith.constant dense<0.000000e+00> : vector<128xf32>
    %33 = vector.multi_reduction <add>, %32, %cst_18 [0] : vector<32x128xf32> to vector<128xf32>
    %34 = vector.shape_cast %33 : vector<128xf32> to vector<1x128xf32>
    %35 = tpu.concatenate %31, %34 in 0 : vector<1x128xf32>, vector<1x128xf32> -> vector<2x128xf32>
    %cst_19 = arith.constant dense<0.000000e+00> : vector<2x128xf32>
    %36 = tpu.matmul %35, %2, %cst_19 {dimension_numbers = #tpu.dot_dimension_numbers<[1], [0], [0], [1], [0, 0, 1, 1], [], []>} : vector<2x128xf32>, vector<128x128xf32>, vector<2x128xf32> -> vector<2x128xf32>
    %37 = vector.extract_strided_slice %36 {offsets = [0, 0], sizes = [1, 128], strides = [1, 1]} : vector<2x128xf32> to vector<1x128xf32>
    %cst_20 = arith.constant 0.001953125 : f32
    %38 = vector.broadcast %cst_20 : f32 to vector<1x128xf32>
    %39 = arith.mulf %37, %38 : vector<1x128xf32>
    %40 = vector.extract_strided_slice %36 {offsets = [1, 0], sizes = [1, 128], strides = [1, 1]} : vector<2x128xf32> to vector<1x128xf32>
    %cst_21 = arith.constant 0.001953125 : f32
    %41 = vector.broadcast %cst_21 : f32 to vector<1x128xf32>
    %42 = arith.mulf %40, %41 : vector<1x128xf32>
    %43 = arith.mulf %39, %39 : vector<1x128xf32>
    %44 = arith.subf %42, %43 : vector<1x128xf32>
    %45 = vector.broadcast %39 : vector<1x128xf32> to vector<32x128xf32>
    %46 = arith.subf %29, %45 : vector<32x128xf32>
    %cst_22 = arith.constant 9.99999974E-6 : f32
    %47 = vector.broadcast %cst_22 : f32 to vector<1x128xf32>
    %48 = arith.addf %44, %47 : vector<1x128xf32>
    %49 = math.rsqrt %48 : vector<1x128xf32>
    %50 = vector.broadcast %49 : vector<1x128xf32> to vector<32x128xf32>
    %51 = arith.mulf %46, %50 : vector<32x128xf32>
    %c1_i32_23 = arith.constant 1 : i32
    %52 = tpu.dynamic_rotate %51 by %c1_i32_23 dim 0 : vector<32x128xf32>, i32 -> vector<32x128xf32>
    %53 = vector.broadcast %0 : vector<32x1xf32> to vector<32x128xf32>
    %54 = arith.mulf %52, %53 : vector<32x128xf32>
    %c31_i32_24 = arith.constant 31 : i32
    %55 = tpu.dynamic_rotate %51 by %c31_i32_24 dim 0 : vector<32x128xf32>, i32 -> vector<32x128xf32>
    %56 = vector.broadcast %1 : vector<32x1xf32> to vector<32x128xf32>
    %57 = arith.mulf %55, %56 : vector<32x128xf32>
    %58 = tpu.concatenate %54, %51, %57 in 1 : vector<32x128xf32>, vector<32x128xf32>, vector<32x128xf32> -> vector<32x384xf32>
    %59 = arith.truncf %58 : vector<32x384xf32> to vector<32x384xbf16>
    %c2 = arith.constant 2 : index
    %c0_25 = arith.constant 0 : index
    %c0_26 = arith.constant 0 : index
    %60 = vector.load %arg2[%c2, %c0_25, %c0_26] : memref<5x384x128xbf16, #tpu.memory_space<vmem>>, vector<1x384x128xbf16>
    %61 = vector.shape_cast %60 : vector<1x384x128xbf16> to vector<384x128xbf16>
    %cst_27 = arith.constant dense<0.000000e+00> : vector<32x128xf32>
    %62 = tpu.matmul %59, %61, %cst_27 {dimension_numbers = #tpu.dot_dimension_numbers<[1], [0], [0], [1], [0, 0, 1, 1], [], []>} : vector<32x384xbf16>, vector<384x128xbf16>, vector<32x128xf32> -> vector<32x128xf32>
    %cst_28 = arith.constant 0.000000e+00 : f32
    %63 = vector.broadcast %cst_28 : f32 to vector<32x128xf32>
    %64 = arith.maximumf %62, %63 : vector<32x128xf32>
    %65 = arith.addf %64, %16 : vector<32x128xf32>
    %cst_29 = arith.constant dense<0.000000e+00> : vector<128xf32>
    %66 = vector.multi_reduction <add>, %65, %cst_29 [0] : vector<32x128xf32> to vector<128xf32>
    %67 = vector.shape_cast %66 : vector<128xf32> to vector<1x128xf32>
    %68 = arith.mulf %65, %65 : vector<32x128xf32>
    %cst_30 = arith.constant dense<0.000000e+00> : vector<128xf32>
    %69 = vector.multi_reduction <add>, %68, %cst_30 [0] : vector<32x128xf32> to vector<128xf32>
    %70 = vector.shape_cast %69 : vector<128xf32> to vector<1x128xf32>
    %71 = tpu.concatenate %67, %70 in 0 : vector<1x128xf32>, vector<1x128xf32> -> vector<2x128xf32>
    %cst_31 = arith.constant dense<0.000000e+00> : vector<2x128xf32>
    %72 = tpu.matmul %71, %2, %cst_31 {dimension_numbers = #tpu.dot_dimension_numbers<[1], [0], [0], [1], [0, 0, 1, 1], [], []>} : vector<2x128xf32>, vector<128x128xf32>, vector<2x128xf32> -> vector<2x128xf32>
    %73 = vector.extract_strided_slice %72 {offsets = [0, 0], sizes = [1, 128], strides = [1, 1]} : vector<2x128xf32> to vector<1x128xf32>
    %cst_32 = arith.constant 0.001953125 : f32
    %74 = vector.broadcast %cst_32 : f32 to vector<1x128xf32>
    %75 = arith.mulf %73, %74 : vector<1x128xf32>
    %76 = vector.extract_strided_slice %72 {offsets = [1, 0], sizes = [1, 128], strides = [1, 1]} : vector<2x128xf32> to vector<1x128xf32>
    %cst_33 = arith.constant 0.001953125 : f32
    %77 = vector.broadcast %cst_33 : f32 to vector<1x128xf32>
    %78 = arith.mulf %76, %77 : vector<1x128xf32>
    %79 = arith.mulf %75, %75 : vector<1x128xf32>
    %80 = arith.subf %78, %79 : vector<1x128xf32>
    %81 = vector.broadcast %75 : vector<1x128xf32> to vector<32x128xf32>
    %82 = arith.subf %65, %81 : vector<32x128xf32>
    %cst_34 = arith.constant 9.99999974E-6 : f32
    %83 = vector.broadcast %cst_34 : f32 to vector<1x128xf32>
    %84 = arith.addf %80, %83 : vector<1x128xf32>
    %85 = math.rsqrt %84 : vector<1x128xf32>
    %86 = vector.broadcast %85 : vector<1x128xf32> to vector<32x128xf32>
    %87 = arith.mulf %82, %86 : vector<32x128xf32>
    %c1_i32_35 = arith.constant 1 : i32
    %88 = tpu.dynamic_rotate %87 by %c1_i32_35 dim 0 : vector<32x128xf32>, i32 -> vector<32x128xf32>
    %89 = vector.broadcast %0 : vector<32x1xf32> to vector<32x128xf32>
    %90 = arith.mulf %88, %89 : vector<32x128xf32>
    %c31_i32_36 = arith.constant 31 : i32
    %91 = tpu.dynamic_rotate %87 by %c31_i32_36 dim 0 : vector<32x128xf32>, i32 -> vector<32x128xf32>
    %92 = vector.broadcast %1 : vector<32x1xf32> to vector<32x128xf32>
    %93 = arith.mulf %91, %92 : vector<32x128xf32>
    %94 = tpu.concatenate %90, %87, %93 in 1 : vector<32x128xf32>, vector<32x128xf32>, vector<32x128xf32> -> vector<32x384xf32>
    %95 = arith.truncf %94 : vector<32x384xf32> to vector<32x384xbf16>
    %c3 = arith.constant 3 : index
    %c0_37 = arith.constant 0 : index
    %c0_38 = arith.constant 0 : index
    %96 = vector.load %arg2[%c3, %c0_37, %c0_38] : memref<5x384x128xbf16, #tpu.memory_space<vmem>>, vector<1x384x128xbf16>
    %97 = vector.shape_cast %96 : vector<1x384x128xbf16> to vector<384x128xbf16>
    %cst_39 = arith.constant dense<0.000000e+00> : vector<32x128xf32>
    %98 = tpu.matmul %95, %97, %cst_39 {dimension_numbers = #tpu.dot_dimension_numbers<[1], [0], [0], [1], [0, 0, 1, 1], [], []>} : vector<32x384xbf16>, vector<384x128xbf16>, vector<32x128xf32> -> vector<32x128xf32>
    %cst_40 = arith.constant 0.000000e+00 : f32
    %99 = vector.broadcast %cst_40 : f32 to vector<32x128xf32>
    %100 = arith.maximumf %98, %99 : vector<32x128xf32>
    %cst_41 = arith.constant dense<0.000000e+00> : vector<128xf32>
    %101 = vector.multi_reduction <add>, %100, %cst_41 [0] : vector<32x128xf32> to vector<128xf32>
    %102 = vector.shape_cast %101 : vector<128xf32> to vector<1x128xf32>
    %103 = arith.mulf %100, %100 : vector<32x128xf32>
    %cst_42 = arith.constant dense<0.000000e+00> : vector<128xf32>
    %104 = vector.multi_reduction <add>, %103, %cst_42 [0] : vector<32x128xf32> to vector<128xf32>
    %105 = vector.shape_cast %104 : vector<128xf32> to vector<1x128xf32>
    %106 = tpu.concatenate %102, %105 in 0 : vector<1x128xf32>, vector<1x128xf32> -> vector<2x128xf32>
    %cst_43 = arith.constant dense<0.000000e+00> : vector<2x128xf32>
    %107 = tpu.matmul %106, %2, %cst_43 {dimension_numbers = #tpu.dot_dimension_numbers<[1], [0], [0], [1], [0, 0, 1, 1], [], []>} : vector<2x128xf32>, vector<128x128xf32>, vector<2x128xf32> -> vector<2x128xf32>
    %108 = vector.extract_strided_slice %107 {offsets = [0, 0], sizes = [1, 128], strides = [1, 1]} : vector<2x128xf32> to vector<1x128xf32>
    %cst_44 = arith.constant 0.001953125 : f32
    %109 = vector.broadcast %cst_44 : f32 to vector<1x128xf32>
    %110 = arith.mulf %108, %109 : vector<1x128xf32>
    %111 = vector.extract_strided_slice %107 {offsets = [1, 0], sizes = [1, 128], strides = [1, 1]} : vector<2x128xf32> to vector<1x128xf32>
    %cst_45 = arith.constant 0.001953125 : f32
    %112 = vector.broadcast %cst_45 : f32 to vector<1x128xf32>
    %113 = arith.mulf %111, %112 : vector<1x128xf32>
    %114 = arith.mulf %110, %110 : vector<1x128xf32>
    %115 = arith.subf %113, %114 : vector<1x128xf32>
    %116 = vector.broadcast %110 : vector<1x128xf32> to vector<32x128xf32>
    %117 = arith.subf %100, %116 : vector<32x128xf32>
    %cst_46 = arith.constant 9.99999974E-6 : f32
    %118 = vector.broadcast %cst_46 : f32 to vector<1x128xf32>
    %119 = arith.addf %115, %118 : vector<1x128xf32>
    %120 = math.rsqrt %119 : vector<1x128xf32>
    %121 = vector.broadcast %120 : vector<1x128xf32> to vector<32x128xf32>
    %122 = arith.mulf %117, %121 : vector<32x128xf32>
    %c1_i32_47 = arith.constant 1 : i32
    %123 = tpu.dynamic_rotate %122 by %c1_i32_47 dim 0 : vector<32x128xf32>, i32 -> vector<32x128xf32>
    %124 = vector.broadcast %0 : vector<32x1xf32> to vector<32x128xf32>
    %125 = arith.mulf %123, %124 : vector<32x128xf32>
    %c31_i32_48 = arith.constant 31 : i32
    %126 = tpu.dynamic_rotate %122 by %c31_i32_48 dim 0 : vector<32x128xf32>, i32 -> vector<32x128xf32>
    %127 = vector.broadcast %1 : vector<32x1xf32> to vector<32x128xf32>
    %128 = arith.mulf %126, %127 : vector<32x128xf32>
    %129 = tpu.concatenate %125, %122, %128 in 1 : vector<32x128xf32>, vector<32x128xf32>, vector<32x128xf32> -> vector<32x384xf32>
    %130 = arith.truncf %129 : vector<32x384xf32> to vector<32x384xbf16>
    %c4 = arith.constant 4 : index
    %c0_49 = arith.constant 0 : index
    %c0_50 = arith.constant 0 : index
    %131 = vector.load %arg2[%c4, %c0_49, %c0_50] : memref<5x384x128xbf16, #tpu.memory_space<vmem>>, vector<1x384x128xbf16>
    %132 = vector.shape_cast %131 : vector<1x384x128xbf16> to vector<384x128xbf16>
    %cst_51 = arith.constant dense<0.000000e+00> : vector<32x128xf32>
    %133 = tpu.matmul %130, %132, %cst_51 {dimension_numbers = #tpu.dot_dimension_numbers<[1], [0], [0], [1], [0, 0, 1, 1], [], []>} : vector<32x384xbf16>, vector<384x128xbf16>, vector<32x128xf32> -> vector<32x128xf32>
    %cst_52 = arith.constant 0.000000e+00 : f32
    %134 = vector.broadcast %cst_52 : f32 to vector<32x128xf32>
    %135 = arith.maximumf %133, %134 : vector<32x128xf32>
    %136 = arith.addf %135, %65 : vector<32x128xf32>
    %cst_53 = arith.constant dense<0.000000e+00> : vector<128xf32>
    %137 = vector.multi_reduction <add>, %136, %cst_53 [0] : vector<32x128xf32> to vector<128xf32>
    %138 = vector.shape_cast %137 : vector<128xf32> to vector<1x128xf32>
    %139 = arith.mulf %136, %136 : vector<32x128xf32>
    %cst_54 = arith.constant dense<0.000000e+00> : vector<128xf32>
    %140 = vector.multi_reduction <add>, %139, %cst_54 [0] : vector<32x128xf32> to vector<128xf32>
    %141 = vector.shape_cast %140 : vector<128xf32> to vector<1x128xf32>
    %142 = tpu.concatenate %138, %141 in 0 : vector<1x128xf32>, vector<1x128xf32> -> vector<2x128xf32>
    %cst_55 = arith.constant dense<0.000000e+00> : vector<2x128xf32>
    %143 = tpu.matmul %142, %2, %cst_55 {dimension_numbers = #tpu.dot_dimension_numbers<[1], [0], [0], [1], [0, 0, 1, 1], [], []>} : vector<2x128xf32>, vector<128x128xf32>, vector<2x128xf32> -> vector<2x128xf32>
    %144 = vector.extract_strided_slice %143 {offsets = [0, 0], sizes = [1, 128], strides = [1, 1]} : vector<2x128xf32> to vector<1x128xf32>
    %cst_56 = arith.constant 0.001953125 : f32
    %145 = vector.broadcast %cst_56 : f32 to vector<1x128xf32>
    %146 = arith.mulf %144, %145 : vector<1x128xf32>
    %147 = vector.extract_strided_slice %143 {offsets = [1, 0], sizes = [1, 128], strides = [1, 1]} : vector<2x128xf32> to vector<1x128xf32>
    %cst_57 = arith.constant 0.001953125 : f32
    %148 = vector.broadcast %cst_57 : f32 to vector<1x128xf32>
    %149 = arith.mulf %147, %148 : vector<1x128xf32>
    %150 = arith.mulf %146, %146 : vector<1x128xf32>
    %151 = arith.subf %149, %150 : vector<1x128xf32>
    %152 = vector.broadcast %146 : vector<1x128xf32> to vector<32x128xf32>
    %153 = arith.subf %136, %152 : vector<32x128xf32>
    %cst_58 = arith.constant 9.99999974E-6 : f32
    %154 = vector.broadcast %cst_58 : f32 to vector<1x128xf32>
    %155 = arith.addf %151, %154 : vector<1x128xf32>
    %156 = math.rsqrt %155 : vector<1x128xf32>
    %157 = vector.broadcast %156 : vector<1x128xf32> to vector<32x128xf32>
    %158 = arith.mulf %153, %157 : vector<32x128xf32>
    %159 = vector.shape_cast %158 : vector<32x128xf32> to vector<2x16x128xf32>
    %cst_59 = arith.constant dense<0.000000e+00> : vector<2x128xf32>
    %160 = vector.multi_reduction <add>, %159, %cst_59 [1] : vector<2x16x128xf32> to vector<2x128xf32>
    %c0_60 = arith.constant 0 : index
    %c0_61 = arith.constant 0 : index
    %161 = vector.load %arg4[%c0_60, %c0_61] : memref<128x8xf32, #tpu.memory_space<vmem>>, vector<128x8xf32>
    %cst_62 = arith.constant dense<0.000000e+00> : vector<2x8xf32>
    %162 = tpu.matmul %160, %161, %cst_62 {dimension_numbers = #tpu.dot_dimension_numbers<[1], [0], [0], [1], [0, 0, 1, 1], [], []>} : vector<2x128xf32>, vector<128x8xf32>, vector<2x8xf32> -> vector<2x8xf32>
    %cst_63 = arith.constant 3.906250e-03 : f32
    %163 = vector.broadcast %cst_63 : f32 to vector<2x8xf32>
    %164 = arith.mulf %162, %163 : vector<2x8xf32>
    %c0_64 = arith.constant 0 : index
    %c0_65 = arith.constant 0 : index
    %165 = vector.load %arg7[%c0_64, %c0_65] : memref<8x12xf32, #tpu.memory_space<vmem>>, vector<8x12xf32>
    %cst_66 = arith.constant dense<0.000000e+00> : vector<2x12xf32>
    %166 = tpu.matmul %164, %165, %cst_66 {dimension_numbers = #tpu.dot_dimension_numbers<[1], [0], [0], [1], [0, 0, 1, 1], [], []>} : vector<2x8xf32>, vector<8x12xf32>, vector<2x12xf32> -> vector<2x12xf32>
    %c0_67 = arith.constant 0 : index
    %c0_68 = arith.constant 0 : index
    %167 = vector.load %arg8[%c0_67, %c0_68] : memref<1x12xf32, #tpu.memory_space<vmem>>, vector<1x12xf32>
    %168 = vector.broadcast %167 : vector<1x12xf32> to vector<2x12xf32>
    %169 = arith.addf %166, %168 : vector<2x12xf32>
    %cst_69 = arith.constant dense<0xFF800000> : vector<2xf32>
    %170 = vector.multi_reduction <maximumf>, %169, %cst_69 [1] : vector<2x12xf32> to vector<2xf32>
    %171 = vector.shape_cast %170 : vector<2xf32> to vector<2x1xf32>
    %172 = vector.broadcast %171 : vector<2x1xf32> to vector<2x12xf32>
    %173 = arith.subf %169, %172 : vector<2x12xf32>
    %174 = math.exp %173 : vector<2x12xf32>
    %cst_70 = arith.constant dense<0.000000e+00> : vector<2xf32>
    %175 = vector.multi_reduction <add>, %174, %cst_70 [1] : vector<2x12xf32> to vector<2xf32>
    %176 = vector.shape_cast %175 : vector<2xf32> to vector<2x1xf32>
    %177 = vector.broadcast %176 : vector<2x1xf32> to vector<2x12xf32>
    %178 = arith.divf %174, %177 : vector<2x12xf32>
    %c0_71 = arith.constant 0 : index
    %c0_72 = arith.constant 0 : index
    %179 = vector.load %arg9[%c0_71, %c0_72] : memref<2x12xf32, #tpu.memory_space<vmem>>, vector<2x12xf32>
    tpu.vector_store %arg9[%c0_71, %c0_72], %178 {strides = array<i32>} : memref<2x12xf32, #tpu.memory_space<vmem>>, vector<2x12xf32>,
    %c0_73 = arith.constant 0 : index
    %c0_74 = arith.constant 0 : index
    %180 = vector.load %arg10[%c0_73, %c0_74] : memref<2x8xf32, #tpu.memory_space<vmem>>, vector<2x8xf32>
    tpu.vector_store %arg10[%c0_73, %c0_74], %164 {strides = array<i32>} : memref<2x8xf32, #tpu.memory_space<vmem>>, vector<2x8xf32>,
    return
  }
  func.func @transform_0(%arg0: i32) -> (i32, i32) {
    %c0_i32 = arith.constant 0 : i32
    %c0_i32_0 = arith.constant 0 : i32
    %c0_i32_1 = arith.constant 0 : i32
    return %c0_i32, %c0_i32_0 : i32, i32
  }
  func.func @transform_1(%arg0: i32) -> (i32, i32, i32) {
    %c0_i32 = arith.constant 0 : i32
    %c0_i32_0 = arith.constant 0 : i32
    %c0_i32_1 = arith.constant 0 : i32
    %c0_i32_2 = arith.constant 0 : i32
    return %c0_i32, %c0_i32_0, %c0_i32_1 : i32, i32, i32
  }
  func.func @transform_2(%arg0: i32) -> (i32, i32) {
    %c0_i32 = arith.constant 0 : i32
    %c0_i32_0 = arith.constant 0 : i32
    %c0_i32_1 = arith.constant 0 : i32
    return %c0_i32, %c0_i32_0 : i32, i32
  }
  func.func @transform_3(%arg0: i32) -> (i32, i32) {
    %c0_i32 = arith.constant 0 : i32
    %c0_i32_0 = arith.constant 0 : i32
    %c0_i32_1 = arith.constant 0 : i32
    return %c0_i32, %c0_i32_0 : i32, i32
  }
  func.func @transform_4(%arg0: i32) -> (i32, i32) {
    %c0_i32 = arith.constant 0 : i32
    %c0_i32_0 = arith.constant 0 : i32
    %c0_i32_1 = arith.constant 0 : i32
    return %c0_i32, %c0_i32_0 : i32, i32
  }
  func.func @transform_5(%arg0: i32) -> (i32, i32) {
    %c0_i32 = arith.constant 0 : i32
    %c0_i32_0 = arith.constant 0 : i32
    %c0_i32_1 = arith.constant 0 : i32
    return %c0_i32, %c0_i32_0 : i32, i32
  }
  func.func @transform_6(%arg0: i32) -> (i32, i32) {
    %c0_i32 = arith.constant 0 : i32
    %c0_i32_0 = arith.constant 0 : i32
    %c0_i32_1 = arith.constant 0 : i32
    return %c0_i32, %c0_i32_0 : i32, i32
  }
  func.func @transform_7(%arg0: i32) -> (i32, i32) {
    %c0_i32 = arith.constant 0 : i32
    %c0_i32_0 = arith.constant 0 : i32
    %c0_i32_1 = arith.constant 0 : i32
    return %c0_i32, %c0_i32_0 : i32, i32
  }
  func.func @transform_8(%arg0: i32) -> (i32, i32) {
    %c0_i32 = arith.constant 0 : i32
    %c0_i32_0 = arith.constant 0 : i32
    %c0_i32_1 = arith.constant 0 : i32
    return %c0_i32, %c0_i32_0 : i32, i32
  }
  func.func @transform_9(%arg0: i32) -> (i32, i32) {
    %c0_i32 = arith.constant 0 : i32
    %c0_i32_0 = arith.constant 0 : i32
    %c0_i32_1 = arith.constant 0 : i32
    return %c0_i32, %c0_i32_0 : i32, i32
  }
}

</mosaic_0001>

<llo_original>
// kernel: speech_res_model_forward.1
$region0: #{speech_res_model_forward.1}
  #allocation0 [shape = 'u32[]', space=smem, size = 0x4, offset = 0x4, fixed_abs, tag = 'smem constant byte address 0x4 - core index']
  #allocation1 [shape = 'u32[144,128]{1,0:T(1,128)}', space=vmem, size = 0x12000, scoped, tag = 'internal scratch']
  %s0 = inlined_call_operand.vmem [shape: f32[32,128], index: 0, kind: input, shape index: {}]
  %s1 = inlined_call_operand.hbm [shape: bf16[5,384,128], index: 1, kind: input, shape index: {}]
  %s2 = inlined_call_operand.vmem [shape: f32[128,128], index: 2, kind: input, shape index: {}]
  %s3 = inlined_call_operand.vmem [shape: f32[128,8], index: 3, kind: input, shape index: {}]
  %s4 = inlined_call_operand.vmem [shape: f32[32,1], index: 4, kind: input, shape index: {}]
  %s5 = inlined_call_operand.vmem [shape: f32[32,1], index: 5, kind: input, shape index: {}]
  %s6 = inlined_call_operand.vmem [shape: f32[8,12], index: 6, kind: input, shape index: {}]
  %s7 = inlined_call_operand.vmem [shape: f32[1,12], index: 7, kind: input, shape index: {}]
  %s8 = inlined_call_operand.hbm [shape: f32[2,12], index: 8, kind: output, shape index: {0}]
  %s9 = inlined_call_operand.hbm [shape: f32[2,8], index: 9, kind: output, shape index: {1}]
  %10 = xla_tuple %s8, %s9
  %s11 = sld [smem:[#allocation0]]
  $region54: #{speech_res_model_forward.1} parent=0
    _
  %s13 = ssub.s32 1, %s11
  %s14 = scalar_select 0, %s13, %s11
  $region1: #{speech_res_model_forward.1} parent=0
    #allocation2 [shape = 'u8[491520]{0}', space=vmem, size = 0x78000, scoped, tag = 'input window, operand 1, single buffered']
    #allocation3 [shape = 's32[1]{0}', space=sflag, size = 0x4, scoped, tag = 'scoped memory for speech_res_model_forward.1']
    #allocation4 [shape = 's32[1]{0}', space=sflag, size = 0x4, scoped, tag = 'scoped memory for speech_res_model_forward.1']
    #allocation5 [shape = 'u8[1024]{0}', space=vmem, size = 0x400, scoped, tag = 'output window, operand 0, single buffered']
    #allocation6 [shape = 'u8[1024]{0}', space=vmem, size = 0x400, scoped, tag = 'output window, operand 1, single buffered']
    #allocation7 [shape = 's32[1]{0}', space=sflag, size = 0x4, scoped, tag = 'scoped memory for speech_res_model_forward.1']
    %15 = vsyncpa [#allocation3], 0
    %16 = vsyncpa [#allocation4], 0
    %17 = vsyncpa [#allocation7], 0
    // Predicated region
    $region2: #{speech_res_model_forward.1} parent=1 // pred_check
      _
    $region3: #{speech_res_model_forward.1} parent=1 // pred_check_branch
      %19 = sbr.rel (0) target = $region5
    $region4: #{speech_res_model_forward.1} parent=1 // pred_region
      _
    $region5: #{speech_res_model_forward.1} parent=1 // pred_fallthru
      _
    // Predicated region
    $region6: #{speech_res_model_forward.1} parent=1 // pred_check
      _
    $region7: #{speech_res_model_forward.1} parent=1 // pred_check_branch
      %21 = sbr.rel (0) target = $region9
    $region8: #{speech_res_model_forward.1} parent=1 // pred_region
      %s23 = ssub.s32 15360, 15360
      %24 = vsyncadd [#allocation3], %s23
      %s25 = sshll.u32 [#allocation2], 4
      %s26 = int_to_ptr.vmem [resolvable:$true] %s25
      %31 = dma.hbm_to_vmem [thread:$0]  %s1, 15360, %s26, [#allocation3], 64, 64, 4
    $region9: #{speech_res_model_forward.1} parent=1 // pred_fallthru
      _
    // Predicated region
    $region10: #{speech_res_model_forward.1} parent=1 // pred_check
      _
    $region11: #{speech_res_model_forward.1} parent=1 // pred_check_branch
      %33 = sbr.rel (0) target = $region13
    $region12: #{speech_res_model_forward.1} parent=1 // pred_region
      _
    $region13: #{speech_res_model_forward.1} parent=1 // pred_fallthru
      _
    // Predicated region
    $region14: #{speech_res_model_forward.1} parent=1 // pred_check
      _
    $region15: #{speech_res_model_forward.1} parent=1 // pred_check_branch
      %35 = sbr.rel (0) target = $region17
    $region16: #{speech_res_model_forward.1} parent=1 // pred_region
      _
    $region17: #{speech_res_model_forward.1} parent=1 // pred_fallthru
      _
    // Predicated region
    $region18: #{speech_res_model_forward.1} parent=1 // pred_check
      _
    $region19: #{speech_res_model_forward.1} parent=1 // pred_check_branch
      %37 = sbr.rel (0) target = $region21
    $region20: #{speech_res_model_forward.1} parent=1 // pred_region
      _
    $region21: #{speech_res_model_forward.1} parent=1 // pred_fallthru
      _
    // Predicated region
    $region22: #{speech_res_model_forward.1} parent=1 // pred_check
      _
    $region23: #{speech_res_model_forward.1} parent=1 // pred_check_branch
      %39 = sbr.rel (0) target = $region25
    $region24: #{speech_res_model_forward.1} parent=1 // pred_region
      _
    $region25: #{speech_res_model_forward.1} parent=1 // pred_fallthru
      _
    // Predicated region
    $region26: #{speech_res_model_forward.1} parent=1 // pred_check
      _
    $region27: #{speech_res_model_forward.1} parent=1 // pred_check_branch
      %41 = sbr.rel (0) target = $region29
    $region28: #{speech_res_model_forward.1} parent=1 // pred_region
      _
    $region29: #{speech_res_model_forward.1} parent=1 // pred_fallthru
      _
    // Predicated region
    $region30: #{speech_res_model_forward.1} parent=1 // pred_check
      _
    $region31: #{speech_res_model_forward.1} parent=1 // pred_check_branch
      %43 = sbr.rel (0) target = $region33
    $region32: #{speech_res_model_forward.1} parent=1 // pred_region
      _
    $region33: #{speech_res_model_forward.1} parent=1 // pred_fallthru
      _
    // Predicated region
    $region34: #{speech_res_model_forward.1} parent=1 // pred_check
      _
    $region35: #{speech_res_model_forward.1} parent=1 // pred_check_branch
      %45 = sbr.rel (0) target = $region37
    $region36: #{speech_res_model_forward.1} parent=1 // pred_region
      %46 = dma.done [#allocation3], 15360
    $region37: #{speech_res_model_forward.1} parent=1 // pred_fallthru
      _
    %v48 = vld [vmem:[%s4] sm:$0xff]
    %v49 = vld [vmem:[%s4 + $0x8] sm:$0xff]
    %v50 = vld [vmem:[%s4 + $0x10] sm:$0xff]
    %v51 = vld [vmem:[%s4 + $0x18] sm:$0xff]
    %v52 = vld [vmem:[%s5] sm:$0xff]
    %v53 = vld [vmem:[%s5 + $0x8] sm:$0xff]
    %v54 = vld [vmem:[%s5 + $0x10] sm:$0xff]
    %v55 = vld [vmem:[%s5 + $0x18] sm:$0xff]
    %v56 = vld [vmem:[%s2] sm:$0xff]
    %v57 = vld [vmem:[%s2 + $0x8] sm:$0xff]
    %v58 = vld [vmem:[%s2 + $0x10] sm:$0xff]
    %v59 = vld [vmem:[%s2 + $0x18] sm:$0xff]
    %v60 = vld [vmem:[%s2 + $0x20] sm:$0xff]
    %v61 = vld [vmem:[%s2 + $0x28] sm:$0xff]
    %v62 = vld [vmem:[%s2 + $0x30] sm:$0xff]
    %v63 = vld [vmem:[%s2 + $0x38] sm:$0xff]
    %v64 = vld [vmem:[%s2 + $0x40] sm:$0xff]
    %v65 = vld [vmem:[%s2 + $0x48] sm:$0xff]
    %v66 = vld [vmem:[%s2 + $0x50] sm:$0xff]
    %v67 = vld [vmem:[%s2 + $0x58] sm:$0xff]
    %v68 = vld [vmem:[%s2 + $0x60] sm:$0xff]
    %v69 = vld [vmem:[%s2 + $0x68] sm:$0xff]
    %v70 = vld [vmem:[%s2 + $0x70] sm:$0xff]
    %v71 = vld [vmem:[%s2 + $0x78] sm:$0xff]
    %v72 = vld [vmem:[%s0] sm:$0xff]
    %v73 = vld [vmem:[%s0 + $0x8] sm:$0xff]
    %v74 = vld [vmem:[%s0 + $0x10] sm:$0xff]
    %v75 = vld [vmem:[%s0 + $0x18] sm:$0xff]
    %v76 = vrot.slane %v72, 7
    %v77 = vrot.slane %v73, 7
    %v78 = vrot.slane %v74, 7
    %v79 = vrot.slane %v75, 7
    %v80 = vlaneseq
    %v81 = vshrl.u32 %v80, 7
    %vm82 = vcmp.lt.s32.totalorder %v81, 1
    %v83 = vsel %vm82, %v78, %v79
    %v84 = vsel %vm82, %v77, %v78
    %v85 = vsel %vm82, %v76, %v77
    %v86 = vsel %vm82, %v79, %v76
    %88 = vset.pattern.permute.xlu0 0
    %89 = vperm.xlu0 %88, %v48
    %v90 = vpop.permute.xlu0 %89
    %93 = vset.pattern.permute.xlu0 0
    %94 = vperm.xlu0 %93, %v49
    %v95 = vpop.permute.xlu0 %94
    %98 = vset.pattern.permute.xlu0 0
    %99 = vperm.xlu0 %98, %v50
    %v100 = vpop.permute.xlu0 %99
    %103 = vset.pattern.permute.xlu0 0
    %104 = vperm.xlu0 %103, %v51
    %v105 = vpop.permute.xlu0 %104
    %v107 = vmul.f32 %v86, %v90
    %v108 = vmul.f32 %v85, %v95
    %v109 = vmul.f32 %v84, %v100
    %v110 = vmul.f32 %v83, %v105
    %v111 = vrot.slane %v72, 1
    %v112 = vrot.slane %v73, 1
    %v113 = vrot.slane %v74, 1
    %v114 = vrot.slane %v75, 1
    %vm115 = vcmp.lt.s32.totalorder %v81, 7
    %v116 = vsel %vm115, %v113, %v114
    %v117 = vsel %vm115, %v112, %v113
    %v118 = vsel %vm115, %v111, %v112
    %v119 = vsel %vm115, %v114, %v111
    %121 = vset.pattern.permute.xlu0 0
    %122 = vperm.xlu0 %121, %v52
    %v123 = vpop.permute.xlu0 %122
    %126 = vset.pattern.permute.xlu0 0
    %127 = vperm.xlu0 %126, %v53
    %v128 = vpop.permute.xlu0 %127
    %131 = vset.pattern.permute.xlu0 0
    %132 = vperm.xlu0 %131, %v54
    %v133 = vpop.permute.xlu0 %132
    %136 = vset.pattern.permute.xlu0 0
    %137 = vperm.xlu0 %136, %v55
    %v138 = vpop.permute.xlu0 %137
    %v140 = vmul.f32 %v118, %v123
    %v141 = vmul.f32 %v117, %v128
    %v142 = vmul.f32 %v116, %v133
    %v143 = vmul.f32 %v119, %v138
    %v144 = vpack.c.bf16 %v108, %v107
    %v145 = vpack.c.bf16 %v73, %v72
    %v146 = vpack.c.bf16 %v141, %v140
    %v147 = vpack.c.bf16 %v110, %v109
    %v148 = vpack.c.bf16 %v75, %v74
    %v149 = vpack.c.bf16 %v143, %v142
    %v150 = vld [vmem:[#allocation2] sm:$0xf]
    %v151 = vld [vmem:[#allocation2 + $0x4] sm:$0xf]
    %v152 = vld [vmem:[#allocation2 + $0x8] sm:$0xf]
    %v153 = vld [vmem:[#allocation2 + $0xc] sm:$0xf]
    %v154 = vld [vmem:[#allocation2 + $0x10] sm:$0xf]
    %v155 = vld [vmem:[#allocation2 + $0x14] sm:$0xf]
    %v156 = vld [vmem:[#allocation2 + $0x18] sm:$0xf]
    %v157 = vld [vmem:[#allocation2 + $0x1c] sm:$0xf]
    %v158 = vld [vmem:[#allocation2 + $0x20] sm:$0xf]
    %v159 = vld [vmem:[#allocation2 + $0x24] sm:$0xf]
    %v160 = vld [vmem:[#allocation2 + $0x28] sm:$0xf]
    %v161 = vld [vmem:[#allocation2 + $0x2c] sm:$0xf]
    %v162 = vld [vmem:[#allocation2 + $0x30] sm:$0xf]
    %v163 = vld [vmem:[#allocation2 + $0x34] sm:$0xf]
    %v164 = vld [vmem:[#allocation2 + $0x38] sm:$0xf]
    %v165 = vld [vmem:[#allocation2 + $0x3c] sm:$0xf]
    %v166 = vld [vmem:[#allocation2 + $0x40] sm:$0xf]
    %v167 = vld [vmem:[#allocation2 + $0x44] sm:$0xf]
    %v168 = vld [vmem:[#allocation2 + $0x48] sm:$0xf]
    %v169 = vld [vmem:[#allocation2 + $0x4c] sm:$0xf]
    %v170 = vld [vmem:[#allocation2 + $0x50] sm:$0xf]
    %v171 = vld [vmem:[#allocation2 + $0x54] sm:$0xf]
    %v172 = vld [vmem:[#allocation2 + $0x58] sm:$0xf]
    %v173 = vld [vmem:[#allocation2 + $0x5c] sm:$0xf]
    %v174 = vld [vmem:[#allocation2 + $0x60] sm:$0xf]
    %v175 = vld [vmem:[#allocation2 + $0x64] sm:$0xf]
    %v176 = vld [vmem:[#allocation2 + $0x68] sm:$0xf]
    %v177 = vld [vmem:[#allocation2 + $0x6c] sm:$0xf]
    %v178 = vld [vmem:[#allocation2 + $0x70] sm:$0xf]
    %v179 = vld [vmem:[#allocation2 + $0x74] sm:$0xf]
    %v180 = vld [vmem:[#allocation2 + $0x78] sm:$0xf]
    %v181 = vld [vmem:[#allocation2 + $0x7c] sm:$0xf]
    %v182 = vld [vmem:[#allocation2 + $0x80] sm:$0xf]
    %v183 = vld [vmem:[#allocation2 + $0x84] sm:$0xf]
    %v184 = vld [vmem:[#allocation2 + $0x88] sm:$0xf]
    %v185 = vld [vmem:[#allocation2 + $0x8c] sm:$0xf]
    %v186 = vld [vmem:[#allocation2 + $0x90] sm:$0xf]
    %v187 = vld [vmem:[#allocation2 + $0x94] sm:$0xf]
    %v188 = vld [vmem:[#allocation2 + $0x98] sm:$0xf]
    %v189 = vld [vmem:[#allocation2 + $0x9c] sm:$0xf]
    %v190 = vld [vmem:[#allocation2 + $0xa0] sm:$0xf]
    %v191 = vld [vmem:[#allocation2 + $0xa4] sm:$0xf]
    %v192 = vld [vmem:[#allocation2 + $0xa8] sm:$0xf]
    %v193 = vld [vmem:[#allocation2 + $0xac] sm:$0xf]
    %v194 = vld [vmem:[#allocation2 + $0xb0] sm:$0xf]
    %v195 = vld [vmem:[#allocation2 + $0xb4] sm:$0xf]
    %v196 = vld [vmem:[#allocation2 + $0xb8] sm:$0xf]
    %v197 = vld [vmem:[#allocation2 + $0xbc] sm:$0xf]
    %v246 = vunpack.c.l.b16 %v150
    %v247 = vunpack.c.l.b16 %v151
    %v248 = vunpack.c.l.b16 %v152
    %v249 = vunpack.c.l.b16 %v153
    %v250 = vunpack.c.l.b16 %v154
    %v251 = vunpack.c.l.b16 %v155
    %v252 = vunpack.c.l.b16 %v156
    %v253 = vunpack.c.l.b16 %v157
    %v254 = vunpack.c.l.b16 %v158
    %v255 = vunpack.c.l.b16 %v159
    %v256 = vunpack.c.l.b16 %v160
    %v257 = vunpack.c.l.b16 %v161
    %v258 = vunpack.c.l.b16 %v162
    %v259 = vunpack.c.l.b16 %v163
    %v260 = vunpack.c.l.b16 %v164
    %v261 = vunpack.c.l.b16 %v165
    %v262 = vunpack.c.l.b16 %v166
    %v263 = vunpack.c.l.b16 %v167
    %v264 = vunpack.c.l.b16 %v168
    %v265 = vunpack.c.l.b16 %v169
    %v266 = vunpack.c.l.b16 %v170
    %v267 = vunpack.c.l.b16 %v171
    %v268 = vunpack.c.l.b16 %v172
    %v269 = vunpack.c.l.b16 %v173
    %v270 = vunpack.c.l.b16 %v174
    %v271 = vunpack.c.l.b16 %v175
    %v272 = vunpack.c.l.b16 %v176
    %v273 = vunpack.c.l.b16 %v177
    %v274 = vunpack.c.l.b16 %v178
    %v275 = vunpack.c.l.b16 %v179
    %v276 = vunpack.c.l.b16 %v180
    %v277 = vunpack.c.l.b16 %v181
    %v278 = vunpack.c.l.b16 %v182
    %v279 = vunpack.c.l.b16 %v183
    %v280 = vunpack.c.l.b16 %v184
    %v281 = vunpack.c.l.b16 %v185
    %v282 = vunpack.c.l.b16 %v186
    %v283 = vunpack.c.l.b16 %v187
    %v284 = vunpack.c.l.b16 %v188
    %v285 = vunpack.c.l.b16 %v189
    %v286 = vunpack.c.l.b16 %v190
    %v287 = vunpack.c.l.b16 %v191
    %v288 = vunpack.c.l.b16 %v192
    %v289 = vunpack.c.l.b16 %v193
    %v290 = vunpack.c.l.b16 %v194
    %v291 = vunpack.c.l.b16 %v195
    %v292 = vunpack.c.l.b16 %v196
    %v293 = vunpack.c.l.b16 %v197
    %v294 = vpack.c.b16 %v247, %v246
    %v295 = vpack.c.b16 %v249, %v248
    %v296 = vpack.c.b16 %v251, %v250
    %v297 = vpack.c.b16 %v253, %v252
    %v298 = vpack.c.b16 %v255, %v254
    %v299 = vpack.c.b16 %v257, %v256
    %v300 = vpack.c.b16 %v259, %v258
    %v301 = vpack.c.b16 %v261, %v260
    %v302 = vpack.c.b16 %v263, %v262
    %v303 = vpack.c.b16 %v265, %v264
    %v304 = vpack.c.b16 %v267, %v266
    %v305 = vpack.c.b16 %v269, %v268
    %v306 = vpack.c.b16 %v271, %v270
    %v307 = vpack.c.b16 %v273, %v272
    %v308 = vpack.c.b16 %v275, %v274
    %v309 = vpack.c.b16 %v277, %v276
    %v310 = vpack.c.b16 %v279, %v278
    %v311 = vpack.c.b16 %v281, %v280
    %v312 = vpack.c.b16 %v283, %v282
    %v313 = vpack.c.b16 %v285, %v284
    %v314 = vpack.c.b16 %v287, %v286
    %v315 = vpack.c.b16 %v289, %v288
    %v316 = vpack.c.b16 %v291, %v290
    %v317 = vpack.c.b16 %v293, %v292
    %342 = vmatprep.subr.bf16.mxu0 0
    %343 = vmatpush1.bf16.msra.mxu0 %v294
    %344 = vmatprep.subr.bf16.mxu0 0
    %345 = vmatpush1.bf16.msra.mxu0 %v295
    %346 = vmatprep.subr.bf16.mxu0 0
    %347 = vmatpush1.bf16.msra.mxu0 %v296
    %348 = vmatprep.subr.bf16.mxu0 0
    %349 = vmatpush1.bf16.msra.mxu0 %v297
    %350 = vmatprep.subr.bf16.mxu0 0
    %351 = vmatpush1.bf16.msra.mxu0 %v298
    %352 = vmatprep.subr.bf16.mxu0 0
    %353 = vmatpush1.bf16.msra.mxu0 %v299
    %354 = vmatprep.subr.bf16.mxu0 0
    %355 = vmatpush1.bf16.msra.mxu0 %v300
    %356 = vmatprep.subr.bf16.mxu0 0
    %357 = vmatpush1.bf16.msra.mxu0 %v301
    %358 = vmatprep.subr.bf16.mxu0 0
    %359 = vmatpush1.bf16.msra.mxu0 %v302
    %360 = vmatprep.subr.bf16.mxu0 0
    %361 = vmatpush1.bf16.msra.mxu0 %v303
    %362 = vmatprep.subr.bf16.mxu0 0
    %363 = vmatpush1.bf16.msra.mxu0 %v304
    %364 = vmatprep.subr.bf16.mxu0 0
    %365 = vmatpush1.bf16.msra.mxu0 %v305
    %366 = vmatprep.subr.bf16.mxu0 0
    %367 = vmatpush1.bf16.msra.mxu0 %v306
    %368 = vmatprep.subr.bf16.mxu0 0
    %369 = vmatpush1.bf16.msra.mxu0 %v307
    %370 = vmatprep.subr.bf16.mxu0 0
    %371 = vmatpush1.bf16.msra.mxu0 %v308
    %372 = vmatprep.subr.bf16.mxu0 0
    %373 = vmatpush1.bf16.msra.mxu0 %v309
    %374 = vmatprep.mubr.bf16.mxu0 %v145
    %375 = vmatmul.mubr.bf16.gmra.mrb[0].mxu0 %v144
    %v376 = vpop.f32.mrb[0].mxu0
    %v377 = vadd.f32 0.0, %v376
    %v378 = vpop.f32.mrb[0].mxu0
    %v379 = vpop.f32.mrb[0].mxu0
    %v380 = vadd.f32 0.0, %v379
    %v381 = vpop.f32.mrb[0].mxu0
    %382 = vmatprep.mubr.bf16.mxu0 %v148
    %383 = vmatmul.mubr.bf16.gmra.mrb[0].mxu0 %v147
    %v384 = vpop.f32.mrb[0].mxu0
    %v385 = vadd.f32 0.0, %v384
    %v386 = vpop.f32.mrb[0].mxu0
    %v387 = vpop.f32.mrb[0].mxu0
    %v388 = vadd.f32 0.0, %v387
    %v389 = vpop.f32.mrb[0].mxu0
    %390 = vdwg.mxu0
    %391 = vmatprep.subr.bf16.mxu0 0
    %392 = vmatpush1.bf16.msra.mxu0 %v310
    %393 = vmatprep.subr.bf16.mxu0 0
    %394 = vmatpush1.bf16.msra.mxu0 %v311
    %395 = vmatprep.subr.bf16.mxu0 0
    %396 = vmatpush1.bf16.msra.mxu0 %v312
    %397 = vmatprep.subr.bf16.mxu0 0
    %398 = vmatpush1.bf16.msra.mxu0 %v313
    %399 = vmatprep.subr.bf16.mxu0 0
    %400 = vmatpush1.bf16.msra.mxu0 %v314
    %401 = vmatprep.subr.bf16.mxu0 0
    %402 = vmatpush1.bf16.msra.mxu0 %v315
    %403 = vmatprep.subr.bf16.mxu0 0
    %404 = vmatpush1.bf16.msra.mxu0 %v316
    %405 = vmatprep.subr.bf16.mxu0 0
    %406 = vmatpush1.bf16.msra.mxu0 %v317
    %407 = vmatprep.subr.bf16.mxu0 0
    %408 = vmatpush1.bf16.msra.mxu0 0
    %409 = vmatprep.subr.bf16.mxu0 0
    %410 = vmatpush1.bf16.msra.mxu0 0
    %411 = vmatprep.subr.bf16.mxu0 0
    %412 = vmatpush1.bf16.msra.mxu0 0
    %413 = vmatprep.subr.bf16.mxu0 0
    %414 = vmatpush1.bf16.msra.mxu0 0
    %415 = vmatprep.subr.bf16.mxu0 0
    %416 = vmatpush1.bf16.msra.mxu0 0
    %417 = vmatprep.subr.bf16.mxu0 0
    %418 = vmatpush1.bf16.msra.mxu0 0
    %419 = vmatprep.subr.bf16.mxu0 0
    %420 = vmatpush1.bf16.msra.mxu0 0
    %421 = vmatprep.subr.bf16.mxu0 0
    %422 = vmatpush1.bf16.msra.mxu0 0
    %423 = vmatprep.mubr.bf16.mxu0 0
    %424 = vmatmul.mubr.bf16.gmra.mrb[0].mxu0 %v146
    %v425 = vpop.f32.mrb[0].mxu0
    %v426 = vadd.f32 %v377, %v425
    %v427 = vpop.f32.mrb[0].mxu0
    %v428 = vpop.f32.mrb[0].mxu0
    %v429 = vadd.f32 %v380, %v428
    %v430 = vpop.f32.mrb[0].mxu0
    %431 = vmatprep.mubr.bf16.mxu0 0
    %432 = vmatmul.mubr.bf16.gmra.mrb[0].mxu0 %v149
    %v433 = vpop.f32.mrb[0].mxu0
    %v434 = vadd.f32 %v385, %v433
    %v435 = vpop.f32.mrb[0].mxu0
    %v436 = vpop.f32.mrb[0].mxu0
    %v437 = vadd.f32 %v388, %v436
    %v438 = vpop.f32.mrb[0].mxu0
    %439 = vdwg.mxu0
    %v440 = vmax.f32 %v426, 0.0
    %v441 = vmax.f32 %v429, 0.0
    %v442 = vmax.f32 %v434, 0.0
    %v443 = vmax.f32 %v437, 0.0
    %v444 = vrot.slane %v440, 7
    %v445 = vrot.slane %v441, 7
    %v446 = vrot.slane %v442, 7
    %v447 = vrot.slane %v443, 7
    %v448 = vsel %vm82, %v446, %v447
    %v449 = vsel %vm82, %v445, %v446
    %v450 = vsel %vm82, %v444, %v445
    %v451 = vsel %vm82, %v447, %v444
    %v452 = vmul.f32 %v451, %v90
    %v453 = vmul.f32 %v450, %v95
    %v454 = vmul.f32 %v449, %v100
    %v455 = vmul.f32 %v448, %v105
    %v456 = vrot.slane %v440, 1
    %v457 = vrot.slane %v441, 1
    %v458 = vrot.slane %v442, 1
    %v459 = vrot.slane %v443, 1
    %v460 = vsel %vm115, %v458, %v459
    %v461 = vsel %vm115, %v457, %v458
    %v462 = vsel %vm115, %v456, %v457
    %v463 = vsel %vm115, %v459, %v456
    %v464 = vmul.f32 %v462, %v123
    %v465 = vmul.f32 %v461, %v128
    %v466 = vmul.f32 %v460, %v133
    %v467 = vmul.f32 %v463, %v138
    %v468 = vpack.c.bf16 %v453, %v452
    %v469 = vpack.c.bf16 %v441, %v440
    %v470 = vpack.c.bf16 %v465, %v464
    %v471 = vpack.c.bf16 %v455, %v454
    %v472 = vpack.c.bf16 %v443, %v442
    %v473 = vpack.c.bf16 %v467, %v466
    %s474 = scalar_lea.vmem [#allocation2], 192
    %v475 = vld [vmem:[%s474] sm:$0xf]
    %v476 = vld [vmem:[%s474 + $0x4] sm:$0xf]
    %v477 = vld [vmem:[%s474 + $0x8] sm:$0xf]
    %v478 = vld [vmem:[%s474 + $0xc] sm:$0xf]
    %v479 = vld [vmem:[%s474 + $0x10] sm:$0xf]
    %v480 = vld [vmem:[%s474 + $0x14] sm:$0xf]
    %v481 = vld [vmem:[%s474 + $0x18] sm:$0xf]
    %v482 = vld [vmem:[%s474 + $0x1c] sm:$0xf]
    %v483 = vld [vmem:[%s474 + $0x20] sm:$0xf]
    %v484 = vld [vmem:[%s474 + $0x24] sm:$0xf]
    %v485 = vld [vmem:[%s474 + $0x28] sm:$0xf]
    %v486 = vld [vmem:[%s474 + $0x2c] sm:$0xf]
    %v487 = vld [vmem:[%s474 + $0x30] sm:$0xf]
    %v488 = vld [vmem:[%s474 + $0x34] sm:$0xf]
    %v489 = vld [vmem:[%s474 + $0x38] sm:$0xf]
    %v490 = vld [vmem:[%s474 + $0x3c] sm:$0xf]
    %v491 = vld [vmem:[%s474 + $0x40] sm:$0xf]
    %v492 = vld [vmem:[%s474 + $0x44] sm:$0xf]
    %v493 = vld [vmem:[%s474 + $0x48] sm:$0xf]
    %v494 = vld [vmem:[%s474 + $0x4c] sm:$0xf]
    %v495 = vld [vmem:[%s474 + $0x50] sm:$0xf]
    %v496 = vld [vmem:[%s474 + $0x54] sm:$0xf]
    %v497 = vld [vmem:[%s474 + $0x58] sm:$0xf]
    %v498 = vld [vmem:[%s474 + $0x5c] sm:$0xf]
    %v499 = vld [vmem:[%s474 + $0x60] sm:$0xf]
    %v500 = vld [vmem:[%s474 + $0x64] sm:$0xf]
    %v501 = vld [vmem:[%s474 + $0x68] sm:$0xf]
    %v502 = vld [vmem:[%s474 + $0x6c] sm:$0xf]
    %v503 = vld [vmem:[%s474 + $0x70] sm:$0xf]
    %v504 = vld [vmem:[%s474 + $0x74] sm:$0xf]
    %v505 = vld [vmem:[%s474 + $0x78] sm:$0xf]
    %v506 = vld [vmem:[%s474 + $0x7c] sm:$0xf]
    %v507 = vld [vmem:[%s474 + $0x80] sm:$0xf]
    %v508 = vld [vmem:[%s474 + $0x84] sm:$0xf]
    %v509 = vld [vmem:[%s474 + $0x88] sm:$0xf]
    %v510 = vld [vmem:[%s474 + $0x8c] sm:$0xf]
    %v511 = vld [vmem:[%s474 + $0x90] sm:$0xf]
    %v512 = vld [vmem:[%s474 + $0x94] sm:$0xf]
    %v513 = vld [vmem:[%s474 + $0x98] sm:$0xf]
    %v514 = vld [vmem:[%s474 + $0x9c] sm:$0xf]
    %v515 = vld [vmem:[%s474 + $0xa0] sm:$0xf]
    %v516 = vld [vmem:[%s474 + $0xa4] sm:$0xf]
    %v517 = vld [vmem:[%s474 + $0xa8] sm:$0xf]
    %v518 = vld [vmem:[%s474 + $0xac] sm:$0xf]
    %v519 = vld [vmem:[%s474 + $0xb0] sm:$0xf]
    %v520 = vld [vmem:[%s474 + $0xb4] sm:$0xf]
    %v521 = vld [vmem:[%s474 + $0xb8] sm:$0xf]
    %v522 = vld [vmem:[%s474 + $0xbc] sm:$0xf]
    %v571 = vunpack.c.l.b16 %v475
    %v572 = vunpack.c.l.b16 %v476
    %v573 = vunpack.c.l.b16 %v477
    %v574 = vunpack.c.l.b16 %v478
    %v575 = vunpack.c.l.b16 %v479
    %v576 = vunpack.c.l.b16 %v480
    %v577 = vunpack.c.l.b16 %v481
    %v578 = vunpack.c.l.b16 %v482
    %v579 = vunpack.c.l.b16 %v483
    %v580 = vunpack.c.l.b16 %v484
    %v581 = vunpack.c.l.b16 %v485
    %v582 = vunpack.c.l.b16 %v486
    %v583 = vunpack.c.l.b16 %v487
    %v584 = vunpack.c.l.b16 %v488
    %v585 = vunpack.c.l.b16 %v489
    %v586 = vunpack.c.l.b16 %v490
    %v587 = vunpack.c.l.b16 %v491
    %v588 = vunpack.c.l.b16 %v492
    %v589 = vunpack.c.l.b16 %v493
    %v590 = vunpack.c.l.b16 %v494
    %v591 = vunpack.c.l.b16 %v495
    %v592 = vunpack.c.l.b16 %v496
    %v593 = vunpack.c.l.b16 %v497
    %v594 = vunpack.c.l.b16 %v498
    %v595 = vunpack.c.l.b16 %v499
    %v596 = vunpack.c.l.b16 %v500
    %v597 = vunpack.c.l.b16 %v501
    %v598 = vunpack.c.l.b16 %v502
    %v599 = vunpack.c.l.b16 %v503
    %v600 = vunpack.c.l.b16 %v504
    %v601 = vunpack.c.l.b16 %v505
    %v602 = vunpack.c.l.b16 %v506
    %v603 = vunpack.c.l.b16 %v507
    %v604 = vunpack.c.l.b16 %v508
    %v605 = vunpack.c.l.b16 %v509
    %v606 = vunpack.c.l.b16 %v510
    %v607 = vunpack.c.l.b16 %v511
    %v608 = vunpack.c.l.b16 %v512
    %v609 = vunpack.c.l.b16 %v513
    %v610 = vunpack.c.l.b16 %v514
    %v611 = vunpack.c.l.b16 %v515
    %v612 = vunpack.c.l.b16 %v516
    %v613 = vunpack.c.l.b16 %v517
    %v614 = vunpack.c.l.b16 %v518
    %v615 = vunpack.c.l.b16 %v519
    %v616 = vunpack.c.l.b16 %v520
    %v617 = vunpack.c.l.b16 %v521
    %v618 = vunpack.c.l.b16 %v522
    %v619 = vpack.c.b16 %v572, %v571
    %v620 = vpack.c.b16 %v574, %v573
    %v621 = vpack.c.b16 %v576, %v575
    %v622 = vpack.c.b16 %v578, %v577
    %v623 = vpack.c.b16 %v580, %v579
    %v624 = vpack.c.b16 %v582, %v581
    %v625 = vpack.c.b16 %v584, %v583
    %v626 = vpack.c.b16 %v586, %v585
    %v627 = vpack.c.b16 %v588, %v587
    %v628 = vpack.c.b16 %v590, %v589
    %v629 = vpack.c.b16 %v592, %v591
    %v630 = vpack.c.b16 %v594, %v593
    %v631 = vpack.c.b16 %v596, %v595
    %v632 = vpack.c.b16 %v598, %v597
    %v633 = vpack.c.b16 %v600, %v599
    %v634 = vpack.c.b16 %v602, %v601
    %v635 = vpack.c.b16 %v604, %v603
    %v636 = vpack.c.b16 %v606, %v605
    %v637 = vpack.c.b16 %v608, %v607
    %v638 = vpack.c.b16 %v610, %v609
    %v639 = vpack.c.b16 %v612, %v611
    %v640 = vpack.c.b16 %v614, %v613
    %v641 = vpack.c.b16 %v616, %v615
    %v642 = vpack.c.b16 %v618, %v617
    %667 = vmatprep.subr.bf16.mxu0 0
    %668 = vmatpush1.bf16.msra.mxu0 %v619
    %669 = vmatprep.subr.bf16.mxu0 0
    %670 = vmatpush1.bf16.msra.mxu0 %v620
    %671 = vmatprep.subr.bf16.mxu0 0
    %672 = vmatpush1.bf16.msra.mxu0 %v621
    %673 = vmatprep.subr.bf16.mxu0 0
    %674 = vmatpush1.bf16.msra.mxu0 %v622
    %675 = vmatprep.subr.bf16.mxu0 0
    %676 = vmatpush1.bf16.msra.mxu0 %v623
    %677 = vmatprep.subr.bf16.mxu0 0
    %678 = vmatpush1.bf16.msra.mxu0 %v624
    %679 = vmatprep.subr.bf16.mxu0 0
    %680 = vmatpush1.bf16.msra.mxu0 %v625
    %681 = vmatprep.subr.bf16.mxu0 0
    %682 = vmatpush1.bf16.msra.mxu0 %v626
    %683 = vmatprep.subr.bf16.mxu0 0
    %684 = vmatpush1.bf16.msra.mxu0 %v627
    %685 = vmatprep.subr.bf16.mxu0 0
    %686 = vmatpush1.bf16.msra.mxu0 %v628
    %687 = vmatprep.subr.bf16.mxu0 0
    %688 = vmatpush1.bf16.msra.mxu0 %v629
    %689 = vmatprep.subr.bf16.mxu0 0
    %690 = vmatpush1.bf16.msra.mxu0 %v630
    %691 = vmatprep.subr.bf16.mxu0 0
    %692 = vmatpush1.bf16.msra.mxu0 %v631
    %693 = vmatprep.subr.bf16.mxu0 0
    %694 = vmatpush1.bf16.msra.mxu0 %v632
    %695 = vmatprep.subr.bf16.mxu0 0
    %696 = vmatpush1.bf16.msra.mxu0 %v633
    %697 = vmatprep.subr.bf16.mxu0 0
    %698 = vmatpush1.bf16.msra.mxu0 %v634
    %699 = vmatprep.mubr.bf16.mxu0 %v469
    %700 = vmatmul.mubr.bf16.gmra.mrb[0].mxu0 %v468
    %v701 = vpop.f32.mrb[0].mxu0
    %v702 = vadd.f32 0.0, %v701
    %v703 = vpop.f32.mrb[0].mxu0
    %v704 = vpop.f32.mrb[0].mxu0
    %v705 = vadd.f32 0.0, %v704
    %v706 = vpop.f32.mrb[0].mxu0
    %707 = vmatprep.mubr.bf16.mxu0 %v472
    %708 = vmatmul.mubr.bf16.gmra.mrb[0].mxu0 %v471
    %v709 = vpop.f32.mrb[0].mxu0
    %v710 = vadd.f32 0.0, %v709
    %v711 = vpop.f32.mrb[0].mxu0
    %v712 = vpop.f32.mrb[0].mxu0
    %v713 = vadd.f32 0.0, %v712
    %v714 = vpop.f32.mrb[0].mxu0
    %715 = vdwg.mxu0
    %716 = vmatprep.subr.bf16.mxu0 0
    %717 = vmatpush1.bf16.msra.mxu0 %v635
    %718 = vmatprep.subr.bf16.mxu0 0
    %719 = vmatpush1.bf16.msra.mxu0 %v636
    %720 = vmatprep.subr.bf16.mxu0 0
    %721 = vmatpush1.bf16.msra.mxu0 %v637
    %722 = vmatprep.subr.bf16.mxu0 0
    %723 = vmatpush1.bf16.msra.mxu0 %v638
    %724 = vmatprep.subr.bf16.mxu0 0
    %725 = vmatpush1.bf16.msra.mxu0 %v639
    %726 = vmatprep.subr.bf16.mxu0 0
    %727 = vmatpush1.bf16.msra.mxu0 %v640
    %728 = vmatprep.subr.bf16.mxu0 0
    %729 = vmatpush1.bf16.msra.mxu0 %v641
    %730 = vmatprep.subr.bf16.mxu0 0
    %731 = vmatpush1.bf16.msra.mxu0 %v642
    %732 = vmatprep.subr.bf16.mxu0 0
    %733 = vmatpush1.bf16.msra.mxu0 0
    %734 = vmatprep.subr.bf16.mxu0 0
    %735 = vmatpush1.bf16.msra.mxu0 0
    %736 = vmatprep.subr.bf16.mxu0 0
    %737 = vmatpush1.bf16.msra.mxu0 0
    %738 = vmatprep.subr.bf16.mxu0 0
    %739 = vmatpush1.bf16.msra.mxu0 0
    %740 = vmatprep.subr.bf16.mxu0 0
    %741 = vmatpush1.bf16.msra.mxu0 0
    %742 = vmatprep.subr.bf16.mxu0 0
    %743 = vmatpush1.bf16.msra.mxu0 0
    %744 = vmatprep.subr.bf16.mxu0 0
    %745 = vmatpush1.bf16.msra.mxu0 0
    %746 = vmatprep.subr.bf16.mxu0 0
    %747 = vmatpush1.bf16.msra.mxu0 0
    %748 = vmatprep.mubr.bf16.mxu0 0
    %749 = vmatmul.mubr.bf16.gmra.mrb[0].mxu0 %v470
    %v750 = vpop.f32.mrb[0].mxu0
    %v751 = vadd.f32 %v702, %v750
    %v752 = vpop.f32.mrb[0].mxu0
    %v753 = vpop.f32.mrb[0].mxu0
    %v754 = vadd.f32 %v705, %v753
    %v755 = vpop.f32.mrb[0].mxu0
    %756 = vmatprep.mubr.bf16.mxu0 0
    %757 = vmatmul.mubr.bf16.gmra.mrb[0].mxu0 %v473
    %v758 = vpop.f32.mrb[0].mxu0
    %v759 = vadd.f32 %v710, %v758
    %v760 = vpop.f32.mrb[0].mxu0
    %v761 = vpop.f32.mrb[0].mxu0
    %v762 = vadd.f32 %v713, %v761
    %v763 = vpop.f32.mrb[0].mxu0
    %764 = vdwg.mxu0
    %v765 = vmax.f32 %v751, 0.0
    %v766 = vmax.f32 %v754, 0.0
    %v767 = vmax.f32 %v759, 0.0
    %v768 = vmax.f32 %v762, 0.0
    %v769 = vadd.f32 %v765, %v766
    %v770 = vadd.f32 %v769, %v767
    %v771 = vadd.f32 %v770, %v768
    %v772 = vrot.slane %v771, 4
    %v773 = vadd.f32 %v771, %v772
    %v774 = vrot.slane %v773, 2
    %v775 = vadd.f32 %v773, %v774
    %v776 = vrot.slane %v775, 1
    %v777 = vadd.f32 %v775, %v776
    %v778 = vmul.f32 %v765, %v765
    %v779 = vmul.f32 %v766, %v766
    %v780 = vmul.f32 %v767, %v767
    %v781 = vmul.f32 %v768, %v768
    %v782 = vadd.f32 %v778, %v779
    %v783 = vadd.f32 %v782, %v780
    %v784 = vadd.f32 %v783, %v781
    %v785 = vrot.slane %v784, 4
    %v786 = vadd.f32 %v784, %v785
    %v787 = vrot.slane %v786, 2
    %v788 = vadd.f32 %v786, %v787
    %v789 = vrot.slane %v788, 1
    %v790 = vadd.f32 %v788, %v789
    %vm791 = vcmask 1040384
    %v792 = vsel %vm791, %v777, %v790
    %793 = vmatprep.subr.mxu0 0.0
    %794 = vmatpush1.msra.mxu0 %v56
    %795 = vmatprep.subr.mxu0 0.0
    %796 = vmatpush1.msra.mxu0 %v57
    %797 = vmatprep.subr.mxu0 0.0
    %798 = vmatpush1.msra.mxu0 %v58
    %799 = vmatprep.subr.mxu0 0.0
    %800 = vmatpush1.msra.mxu0 %v59
    %801 = vmatprep.subr.mxu0 0.0
    %802 = vmatpush1.msra.mxu0 %v60
    %803 = vmatprep.subr.mxu0 0.0
    %804 = vmatpush1.msra.mxu0 %v61
    %805 = vmatprep.subr.mxu0 0.0
    %806 = vmatpush1.msra.mxu0 %v62
    %807 = vmatprep.subr.mxu0 0.0
    %808 = vmatpush1.msra.mxu0 %v63
    %809 = vmatprep.subr.mxu0 0.0
    %810 = vmatpush1.msra.mxu0 %v64
    %811 = vmatprep.subr.mxu0 0.0
    %812 = vmatpush1.msra.mxu0 %v65
    %813 = vmatprep.subr.mxu0 0.0
    %814 = vmatpush1.msra.mxu0 %v66
    %815 = vmatprep.subr.mxu0 0.0
    %816 = vmatpush1.msra.mxu0 %v67
    %817 = vmatprep.subr.mxu0 0.0
    %818 = vmatpush1.msra.mxu0 %v68
    %819 = vmatprep.subr.mxu0 0.0
    %820 = vmatpush1.msra.mxu0 %v69
    %821 = vmatprep.subr.mxu0 0.0
    %822 = vmatpush1.msra.mxu0 %v70
    %823 = vmatprep.subr.mxu0 0.0
    %824 = vmatpush1.msra.mxu0 %v71
    %825 = vmatprep.subr.mxu0 0.0
    %826 = vmatpush1.msra.mxu0 0.0
    %827 = vmatprep.subr.mxu0 0.0
    %828 = vmatpush1.msra.mxu0 0.0
    %829 = vmatprep.subr.mxu0 0.0
    %830 = vmatpush1.msra.mxu0 0.0
    %831 = vmatprep.subr.mxu0 0.0
    %832 = vmatpush1.msra.mxu0 0.0
    %833 = vmatprep.subr.mxu0 0.0
    %834 = vmatpush1.msra.mxu0 0.0
    %835 = vmatprep.subr.mxu0 0.0
    %836 = vmatpush1.msra.mxu0 0.0
    %837 = vmatprep.subr.mxu0 0.0
    %838 = vmatpush1.msra.mxu0 0.0
    %839 = vmatprep.subr.mxu0 0.0
    %840 = vmatpush1.msra.mxu0 0.0
    %841 = vmatprep.subr.mxu0 0.0
    %842 = vmatpush1.msra.mxu0 0.0
    %843 = vmatprep.subr.mxu0 0.0
    %844 = vmatpush1.msra.mxu0 0.0
    %845 = vmatprep.subr.mxu0 0.0
    %846 = vmatpush1.msra.mxu0 0.0
    %847 = vmatprep.subr.mxu0 0.0
    %848 = vmatpush1.msra.mxu0 0.0
    %849 = vmatprep.subr.mxu0 0.0
    %850 = vmatpush1.msra.mxu0 0.0
    %851 = vmatprep.subr.mxu0 0.0
    %852 = vmatpush1.msra.mxu0 0.0
    %853 = vmatprep.subr.mxu0 0.0
    %854 = vmatpush1.msra.mxu0 0.0
    %855 = vmatprep.subr.mxu0 0.0
    %856 = vmatpush1.msra.mxu0 0.0
    %857 = vmatprep.mubr.f32.mxu0 0.0
    %858 = vmatmul.mubr.f32.gmra.mrb[0].mxu0 %v792
    %v859 = vpop.f32.mrb[0].mxu0
    %v860 = vadd.f32 0.0, %v859
    %v861 = vpop.f32.mrb[0].mxu0
    %862 = vdwg.mxu0
    %v863 = vmul.f32 %v860, 0.001953125
    %v864 = vmul.f32 %v863, %v863
    %v866 = vrot.slane %v864, 7
    %v868 = vsub.f32 %v863, %v866
    %v869 = vlaneseq
    %v870 = vshrl.u32 %v869, 7
    %v871 = vsub.s32 0, %v870
    %v872 = vrot.slane %v863, %v871
    %v873 = vsub.f32 %v765, %v872
    %v874 = vsub.f32 %v766, %v872
    %v875 = vsub.f32 %v767, %v872
    %v876 = vsub.f32 %v768, %v872
    %v877 = vadd.f32 %v868, 1e-05
    %v878 = vrsqrt.pop %v877
    %v879 = vlaneseq
    %v880 = vshrl.u32 %v879, 7
    %v881 = vsub.s32 1, %v880
    %v882 = vrot.slane %v878, %v881
    %v883 = vmul.f32 %v873, %v882
    %v884 = vmul.f32 %v874, %v882
    %v885 = vmul.f32 %v875, %v882
    %v886 = vmul.f32 %v876, %v882
    %v887 = vrot.slane %v883, 7
    %v888 = vrot.slane %v884, 7
    %v889 = vrot.slane %v885, 7
    %v890 = vrot.slane %v886, 7
    %v891 = vsel %vm82, %v889, %v890
    %v892 = vsel %vm82, %v888, %v889
    %v893 = vsel %vm82, %v887, %v888
    %v894 = vsel %vm82, %v890, %v887
    %v895 = vmul.f32 %v894, %v90
    %v896 = vmul.f32 %v893, %v95
    %v897 = vmul.f32 %v892, %v100
    %v898 = vmul.f32 %v891, %v105
    %v899 = vrot.slane %v883, 1
    %v900 = vrot.slane %v884, 1
    %v901 = vrot.slane %v885, 1
    %v902 = vrot.slane %v886, 1
    %v903 = vsel %vm115, %v901, %v902
    %v904 = vsel %vm115, %v900, %v901
    %v905 = vsel %vm115, %v899, %v900
    %v906 = vsel %vm115, %v902, %v899
    %v907 = vmul.f32 %v905, %v123
    %v908 = vmul.f32 %v904, %v128
    %v909 = vmul.f32 %v903, %v133
    %v910 = vmul.f32 %v906, %v138
    %v911 = vpack.c.bf16 %v896, %v895
    %v912 = vpack.c.bf16 %v884, %v883
    %v913 = vpack.c.bf16 %v908, %v907
    %v914 = vpack.c.bf16 %v898, %v897
    %v915 = vpack.c.bf16 %v886, %v885
    %v916 = vpack.c.bf16 %v910, %v909
    %s917 = scalar_lea.vmem [#allocation2], 384
    %v918 = vld [vmem:[%s917] sm:$0xf]
    %v919 = vld [vmem:[%s917 + $0x4] sm:$0xf]
    %v920 = vld [vmem:[%s917 + $0x8] sm:$0xf]
    %v921 = vld [vmem:[%s917 + $0xc] sm:$0xf]
    %v922 = vld [vmem:[%s917 + $0x10] sm:$0xf]
    %v923 = vld [vmem:[%s917 + $0x14] sm:$0xf]
    %v924 = vld [vmem:[%s917 + $0x18] sm:$0xf]
    %v925 = vld [vmem:[%s917 + $0x1c] sm:$0xf]
    %v926 = vld [vmem:[%s917 + $0x20] sm:$0xf]
    %v927 = vld [vmem:[%s917 + $0x24] sm:$0xf]
    %v928 = vld [vmem:[%s917 + $0x28] sm:$0xf]
    %v929 = vld [vmem:[%s917 + $0x2c] sm:$0xf]
    %v930 = vld [vmem:[%s917 + $0x30] sm:$0xf]
    %v931 = vld [vmem:[%s917 + $0x34] sm:$0xf]
    %v932 = vld [vmem:[%s917 + $0x38] sm:$0xf]
    %v933 = vld [vmem:[%s917 + $0x3c] sm:$0xf]
    %v934 = vld [vmem:[%s917 + $0x40] sm:$0xf]
    %v935 = vld [vmem:[%s917 + $0x44] sm:$0xf]
    %v936 = vld [vmem:[%s917 + $0x48] sm:$0xf]
    %v937 = vld [vmem:[%s917 + $0x4c] sm:$0xf]
    %v938 = vld [vmem:[%s917 + $0x50] sm:$0xf]
    %v939 = vld [vmem:[%s917 + $0x54] sm:$0xf]
    %v940 = vld [vmem:[%s917 + $0x58] sm:$0xf]
    %v941 = vld [vmem:[%s917 + $0x5c] sm:$0xf]
    %v942 = vld [vmem:[%s917 + $0x60] sm:$0xf]
    %v943 = vld [vmem:[%s917 + $0x64] sm:$0xf]
    %v944 = vld [vmem:[%s917 + $0x68] sm:$0xf]
    %v945 = vld [vmem:[%s917 + $0x6c] sm:$0xf]
    %v946 = vld [vmem:[%s917 + $0x70] sm:$0xf]
    %v947 = vld [vmem:[%s917 + $0x74] sm:$0xf]
    %v948 = vld [vmem:[%s917 + $0x78] sm:$0xf]
    %v949 = vld [vmem:[%s917 + $0x7c] sm:$0xf]
    %v950 = vld [vmem:[%s917 + $0x80] sm:$0xf]
    %v951 = vld [vmem:[%s917 + $0x84] sm:$0xf]
    %v952 = vld [vmem:[%s917 + $0x88] sm:$0xf]
    %v953 = vld [vmem:[%s917 + $0x8c] sm:$0xf]
    %v954 = vld [vmem:[%s917 + $0x90] sm:$0xf]
    %v955 = vld [vmem:[%s917 + $0x94] sm:$0xf]
    %v956 = vld [vmem:[%s917 + $0x98] sm:$0xf]
    %v957 = vld [vmem:[%s917 + $0x9c] sm:$0xf]
    %v958 = vld [vmem:[%s917 + $0xa0] sm:$0xf]
    %v959 = vld [vmem:[%s917 + $0xa4] sm:$0xf]
    %v960 = vld [vmem:[%s917 + $0xa8] sm:$0xf]
    %v961 = vld [vmem:[%s917 + $0xac] sm:$0xf]
    %v962 = vld [vmem:[%s917 + $0xb0] sm:$0xf]
    %v963 = vld [vmem:[%s917 + $0xb4] sm:$0xf]
    %v964 = vld [vmem:[%s917 + $0xb8] sm:$0xf]
    %v965 = vld [vmem:[%s917 + $0xbc] sm:$0xf]
    %v1014 = vunpack.c.l.b16 %v918
    %v1015 = vunpack.c.l.b16 %v919
    %v1016 = vunpack.c.l.b16 %v920
    %v1017 = vunpack.c.l.b16 %v921
    %v1018 = vunpack.c.l.b16 %v922
    %v1019 = vunpack.c.l.b16 %v923
    %v1020 = vunpack.c.l.b16 %v924
    %v1021 = vunpack.c.l.b16 %v925
    %v1022 = vunpack.c.l.b16 %v926
    %v1023 = vunpack.c.l.b16 %v927
    %v1024 = vunpack.c.l.b16 %v928
    %v1025 = vunpack.c.l.b16 %v929
    %v1026 = vunpack.c.l.b16 %v930
    %v1027 = vunpack.c.l.b16 %v931
    %v1028 = vunpack.c.l.b16 %v932
    %v1029 = vunpack.c.l.b16 %v933
    %v1030 = vunpack.c.l.b16 %v934
    %v1031 = vunpack.c.l.b16 %v935
    %v1032 = vunpack.c.l.b16 %v936
    %v1033 = vunpack.c.l.b16 %v937
    %v1034 = vunpack.c.l.b16 %v938
    %v1035 = vunpack.c.l.b16 %v939
    %v1036 = vunpack.c.l.b16 %v940
    %v1037 = vunpack.c.l.b16 %v941
    %v1038 = vunpack.c.l.b16 %v942
    %v1039 = vunpack.c.l.b16 %v943
    %v1040 = vunpack.c.l.b16 %v944
    %v1041 = vunpack.c.l.b16 %v945
    %v1042 = vunpack.c.l.b16 %v946
    %v1043 = vunpack.c.l.b16 %v947
    %v1044 = vunpack.c.l.b16 %v948
    %v1045 = vunpack.c.l.b16 %v949
    %v1046 = vunpack.c.l.b16 %v950
    %v1047 = vunpack.c.l.b16 %v951
    %v1048 = vunpack.c.l.b16 %v952
    %v1049 = vunpack.c.l.b16 %v953
    %v1050 = vunpack.c.l.b16 %v954
    %v1051 = vunpack.c.l.b16 %v955
    %v1052 = vunpack.c.l.b16 %v956
    %v1053 = vunpack.c.l.b16 %v957
    %v1054 = vunpack.c.l.b16 %v958
    %v1055 = vunpack.c.l.b16 %v959
    %v1056 = vunpack.c.l.b16 %v960
    %v1057 = vunpack.c.l.b16 %v961
    %v1058 = vunpack.c.l.b16 %v962
    %v1059 = vunpack.c.l.b16 %v963
    %v1060 = vunpack.c.l.b16 %v964
    %v1061 = vunpack.c.l.b16 %v965
    %v1062 = vpack.c.b16 %v1015, %v1014
    %v1063 = vpack.c.b16 %v1017, %v1016
    %v1064 = vpack.c.b16 %v1019, %v1018
    %v1065 = vpack.c.b16 %v1021, %v1020
    %v1066 = vpack.c.b16 %v1023, %v1022
    %v1067 = vpack.c.b16 %v1025, %v1024
    %v1068 = vpack.c.b16 %v1027, %v1026
    %v1069 = vpack.c.b16 %v1029, %v1028
    %v1070 = vpack.c.b16 %v1031, %v1030
    %v1071 = vpack.c.b16 %v1033, %v1032
    %v1072 = vpack.c.b16 %v1035, %v1034
    %v1073 = vpack.c.b16 %v1037, %v1036
    %v1074 = vpack.c.b16 %v1039, %v1038
    %v1075 = vpack.c.b16 %v1041, %v1040
    %v1076 = vpack.c.b16 %v1043, %v1042
    %v1077 = vpack.c.b16 %v1045, %v1044
    %v1078 = vpack.c.b16 %v1047, %v1046
    %v1079 = vpack.c.b16 %v1049, %v1048
    %v1080 = vpack.c.b16 %v1051, %v1050
    %v1081 = vpack.c.b16 %v1053, %v1052
    %v1082 = vpack.c.b16 %v1055, %v1054
    %v1083 = vpack.c.b16 %v1057, %v1056
    %v1084 = vpack.c.b16 %v1059, %v1058
    %v1085 = vpack.c.b16 %v1061, %v1060
    %1110 = vmatprep.subr.bf16.mxu0 0
    %1111 = vmatpush1.bf16.msra.mxu0 %v1062
    %1112 = vmatprep.subr.bf16.mxu0 0
    %1113 = vmatpush1.bf16.msra.mxu0 %v1063
    %1114 = vmatprep.subr.bf16.mxu0 0
    %1115 = vmatpush1.bf16.msra.mxu0 %v1064
    %1116 = vmatprep.subr.bf16.mxu0 0
    %1117 = vmatpush1.bf16.msra.mxu0 %v1065
    %1118 = vmatprep.subr.bf16.mxu0 0
    %1119 = vmatpush1.bf16.msra.mxu0 %v1066
    %1120 = vmatprep.subr.bf16.mxu0 0
    %1121 = vmatpush1.bf16.msra.mxu0 %v1067
    %1122 = vmatprep.subr.bf16.mxu0 0
    %1123 = vmatpush1.bf16.msra.mxu0 %v1068
    %1124 = vmatprep.subr.bf16.mxu0 0
    %1125 = vmatpush1.bf16.msra.mxu0 %v1069
    %1126 = vmatprep.subr.bf16.mxu0 0
    %1127 = vmatpush1.bf16.msra.mxu0 %v1070
    %1128 = vmatprep.subr.bf16.mxu0 0
    %1129 = vmatpush1.bf16.msra.mxu0 %v1071
    %1130 = vmatprep.subr.bf16.mxu0 0
    %1131 = vmatpush1.bf16.msra.mxu0 %v1072
    %1132 = vmatprep.subr.bf16.mxu0 0
    %1133 = vmatpush1.bf16.msra.mxu0 %v1073
    %1134 = vmatprep.subr.bf16.mxu0 0
    %1135 = vmatpush1.bf16.msra.mxu0 %v1074
    %1136 = vmatprep.subr.bf16.mxu0 0
    %1137 = vmatpush1.bf16.msra.mxu0 %v1075
    %1138 = vmatprep.subr.bf16.mxu0 0
    %1139 = vmatpush1.bf16.msra.mxu0 %v1076
    %1140 = vmatprep.subr.bf16.mxu0 0
    %1141 = vmatpush1.bf16.msra.mxu0 %v1077
    %1142 = vmatprep.mubr.bf16.mxu0 %v912
    %1143 = vmatmul.mubr.bf16.gmra.mrb[0].mxu0 %v911
    %v1144 = vpop.f32.mrb[0].mxu0
    %v1145 = vadd.f32 0.0, %v1144
    %v1146 = vpop.f32.mrb[0].mxu0
    %v1147 = vpop.f32.mrb[0].mxu0
    %v1148 = vadd.f32 0.0, %v1147
    %v1149 = vpop.f32.mrb[0].mxu0
    %1150 = vmatprep.mubr.bf16.mxu0 %v915
    %1151 = vmatmul.mubr.bf16.gmra.mrb[0].mxu0 %v914
    %v1152 = vpop.f32.mrb[0].mxu0
    %v1153 = vadd.f32 0.0, %v1152
    %v1154 = vpop.f32.mrb[0].mxu0
    %v1155 = vpop.f32.mrb[0].mxu0
    %v1156 = vadd.f32 0.0, %v1155
    %v1157 = vpop.f32.mrb[0].mxu0
    %1158 = vdwg.mxu0
    %1159 = vmatprep.subr.bf16.mxu0 0
    %1160 = vmatpush1.bf16.msra.mxu0 %v1078
    %1161 = vmatprep.subr.bf16.mxu0 0
    %1162 = vmatpush1.bf16.msra.mxu0 %v1079
    %1163 = vmatprep.subr.bf16.mxu0 0
    %1164 = vmatpush1.bf16.msra.mxu0 %v1080
    %1165 = vmatprep.subr.bf16.mxu0 0
    %1166 = vmatpush1.bf16.msra.mxu0 %v1081
    %1167 = vmatprep.subr.bf16.mxu0 0
    %1168 = vmatpush1.bf16.msra.mxu0 %v1082
    %1169 = vmatprep.subr.bf16.mxu0 0
    %1170 = vmatpush1.bf16.msra.mxu0 %v1083
    %1171 = vmatprep.subr.bf16.mxu0 0
    %1172 = vmatpush1.bf16.msra.mxu0 %v1084
    %1173 = vmatprep.subr.bf16.mxu0 0
    %1174 = vmatpush1.bf16.msra.mxu0 %v1085
    %1175 = vmatprep.subr.bf16.mxu0 0
    %1176 = vmatpush1.bf16.msra.mxu0 0
    %1177 = vmatprep.subr.bf16.mxu0 0
    %1178 = vmatpush1.bf16.msra.mxu0 0
    %1179 = vmatprep.subr.bf16.mxu0 0
    %1180 = vmatpush1.bf16.msra.mxu0 0
    %1181 = vmatprep.subr.bf16.mxu0 0
    %1182 = vmatpush1.bf16.msra.mxu0 0
    %1183 = vmatprep.subr.bf16.mxu0 0
    %1184 = vmatpush1.bf16.msra.mxu0 0
    %1185 = vmatprep.subr.bf16.mxu0 0
    %1186 = vmatpush1.bf16.msra.mxu0 0
    %1187 = vmatprep.subr.bf16.mxu0 0
    %1188 = vmatpush1.bf16.msra.mxu0 0
    %1189 = vmatprep.subr.bf16.mxu0 0
    %1190 = vmatpush1.bf16.msra.mxu0 0
    %1191 = vmatprep.mubr.bf16.mxu0 0
    %1192 = vmatmul.mubr.bf16.gmra.mrb[0].mxu0 %v913
    %v1193 = vpop.f32.mrb[0].mxu0
    %v1194 = vadd.f32 %v1145, %v1193
    %v1195 = vpop.f32.mrb[0].mxu0
    %v1196 = vpop.f32.mrb[0].mxu0
    %v1197 = vadd.f32 %v1148, %v1196
    %v1198 = vpop.f32.mrb[0].mxu0
    %1199 = vmatprep.mubr.bf16.mxu0 0
    %1200 = vmatmul.mubr.bf16.gmra.mrb[0].mxu0 %v916
    %v1201 = vpop.f32.mrb[0].mxu0
    %v1202 = vadd.f32 %v1153, %v1201
    %v1203 = vpop.f32.mrb[0].mxu0
    %v1204 = vpop.f32.mrb[0].mxu0
    %v1205 = vadd.f32 %v1156, %v1204
    %v1206 = vpop.f32.mrb[0].mxu0
    %1207 = vdwg.mxu0
    %v1208 = vmax.f32 %v1194, 0.0
    %v1209 = vmax.f32 %v1197, 0.0
    %v1210 = vmax.f32 %v1202, 0.0
    %v1211 = vmax.f32 %v1205, 0.0
    %v1212 = vadd.f32 %v1208, %v440
    %v1213 = vadd.f32 %v1209, %v441
    %v1214 = vadd.f32 %v1210, %v442
    %v1215 = vadd.f32 %v1211, %v443
    %v1216 = vadd.f32 %v1212, %v1213
    %v1217 = vadd.f32 %v1216, %v1214
    %v1218 = vadd.f32 %v1217, %v1215
    %v1219 = vrot.slane %v1218, 4
    %v1220 = vadd.f32 %v1218, %v1219
    %v1221 = vrot.slane %v1220, 2
    %v1222 = vadd.f32 %v1220, %v1221
    %v1223 = vrot.slane %v1222, 1
    %v1224 = vadd.f32 %v1222, %v1223
    %v1225 = vmul.f32 %v1212, %v1212
    %v1226 = vmul.f32 %v1213, %v1213
    %v1227 = vmul.f32 %v1214, %v1214
    %v1228 = vmul.f32 %v1215, %v1215
    %v1229 = vadd.f32 %v1225, %v1226
    %v1230 = vadd.f32 %v1229, %v1227
    %v1231 = vadd.f32 %v1230, %v1228
    %v1232 = vrot.slane %v1231, 4
    %v1233 = vadd.f32 %v1231, %v1232
    %v1234 = vrot.slane %v1233, 2
    %v1235 = vadd.f32 %v1233, %v1234
    %v1236 = vrot.slane %v1235, 1
    %v1237 = vadd.f32 %v1235, %v1236
    %v1238 = vsel %vm791, %v1224, %v1237
    %1239 = vmatprep.subr.mxu0 0.0
    %1240 = vmatpush1.msra.mxu0 %v56
    %1241 = vmatprep.subr.mxu0 0.0
    %1242 = vmatpush1.msra.mxu0 %v57
    %1243 = vmatprep.subr.mxu0 0.0
    %1244 = vmatpush1.msra.mxu0 %v58
    %1245 = vmatprep.subr.mxu0 0.0
    %1246 = vmatpush1.msra.mxu0 %v59
    %1247 = vmatprep.subr.mxu0 0.0
    %1248 = vmatpush1.msra.mxu0 %v60
    %1249 = vmatprep.subr.mxu0 0.0
    %1250 = vmatpush1.msra.mxu0 %v61
    %1251 = vmatprep.subr.mxu0 0.0
    %1252 = vmatpush1.msra.mxu0 %v62
    %1253 = vmatprep.subr.mxu0 0.0
    %1254 = vmatpush1.msra.mxu0 %v63
    %1255 = vmatprep.subr.mxu0 0.0
    %1256 = vmatpush1.msra.mxu0 %v64
    %1257 = vmatprep.subr.mxu0 0.0
    %1258 = vmatpush1.msra.mxu0 %v65
    %1259 = vmatprep.subr.mxu0 0.0
    %1260 = vmatpush1.msra.mxu0 %v66
    %1261 = vmatprep.subr.mxu0 0.0
    %1262 = vmatpush1.msra.mxu0 %v67
    %1263 = vmatprep.subr.mxu0 0.0
    %1264 = vmatpush1.msra.mxu0 %v68
    %1265 = vmatprep.subr.mxu0 0.0
    %1266 = vmatpush1.msra.mxu0 %v69
    %1267 = vmatprep.subr.mxu0 0.0
    %1268 = vmatpush1.msra.mxu0 %v70
    %1269 = vmatprep.subr.mxu0 0.0
    %1270 = vmatpush1.msra.mxu0 %v71
    %1271 = vmatprep.subr.mxu0 0.0
    %1272 = vmatpush1.msra.mxu0 0.0
    %1273 = vmatprep.subr.mxu0 0.0
    %1274 = vmatpush1.msra.mxu0 0.0
    %1275 = vmatprep.subr.mxu0 0.0
    %1276 = vmatpush1.msra.mxu0 0.0
    %1277 = vmatprep.subr.mxu0 0.0
    %1278 = vmatpush1.msra.mxu0 0.0
    %1279 = vmatprep.subr.mxu0 0.0
    %1280 = vmatpush1.msra.mxu0 0.0
    %1281 = vmatprep.subr.mxu0 0.0
    %1282 = vmatpush1.msra.mxu0 0.0
    %1283 = vmatprep.subr.mxu0 0.0
    %1284 = vmatpush1.msra.mxu0 0.0
    %1285 = vmatprep.subr.mxu0 0.0
    %1286 = vmatpush1.msra.mxu0 0.0
    %1287 = vmatprep.subr.mxu0 0.0
    %1288 = vmatpush1.msra.mxu0 0.0
    %1289 = vmatprep.subr.mxu0 0.0
    %1290 = vmatpush1.msra.mxu0 0.0
    %1291 = vmatprep.subr.mxu0 0.0
    %1292 = vmatpush1.msra.mxu0 0.0
    %1293 = vmatprep.subr.mxu0 0.0
    %1294 = vmatpush1.msra.mxu0 0.0
    %1295 = vmatprep.subr.mxu0 0.0
    %1296 = vmatpush1.msra.mxu0 0.0
    %1297 = vmatprep.subr.mxu0 0.0
    %1298 = vmatpush1.msra.mxu0 0.0
    %1299 = vmatprep.subr.mxu0 0.0
    %1300 = vmatpush1.msra.mxu0 0.0
    %1301 = vmatprep.subr.mxu0 0.0
    %1302 = vmatpush1.msra.mxu0 0.0
    %1303 = vmatprep.mubr.f32.mxu0 0.0
    %1304 = vmatmul.mubr.f32.gmra.mrb[0].mxu0 %v1238
    %v1305 = vpop.f32.mrb[0].mxu0
    %v1306 = vadd.f32 0.0, %v1305
    %v1307 = vpop.f32.mrb[0].mxu0
    %1308 = vdwg.mxu0
    %v1309 = vmul.f32 %v1306, 0.001953125
    %v1310 = vmul.f32 %v1309, %v1309
    %v1312 = vrot.slane %v1310, 7
    %v1314 = vsub.f32 %v1309, %v1312
    %v1315 = vlaneseq
    %v1316 = vshrl.u32 %v1315, 7
    %v1317 = vsub.s32 0, %v1316
    %v1318 = vrot.slane %v1309, %v1317
    %v1319 = vsub.f32 %v1212, %v1318
    %v1320 = vsub.f32 %v1213, %v1318
    %v1321 = vsub.f32 %v1214, %v1318
    %v1322 = vsub.f32 %v1215, %v1318
    %v1323 = vadd.f32 %v1314, 1e-05
    %v1324 = vrsqrt.pop %v1323
    %v1325 = vlaneseq
    %v1326 = vshrl.u32 %v1325, 7
    %v1327 = vsub.s32 1, %v1326
    %v1328 = vrot.slane %v1324, %v1327
    %v1329 = vmul.f32 %v1319, %v1328
    %v1330 = vmul.f32 %v1320, %v1328
    %v1331 = vmul.f32 %v1321, %v1328
    %v1332 = vmul.f32 %v1322, %v1328
    %v1333 = vrot.slane %v1329, 7
    %v1334 = vrot.slane %v1330, 7
    %v1335 = vrot.slane %v1331, 7
    %v1336 = vrot.slane %v1332, 7
    %v1337 = vsel %vm82, %v1335, %v1336
    %v1338 = vsel %vm82, %v1334, %v1335
    %v1339 = vsel %vm82, %v1333, %v1334
    %v1340 = vsel %vm82, %v1336, %v1333
    %v1341 = vmul.f32 %v1340, %v90
    %v1342 = vmul.f32 %v1339, %v95
    %v1343 = vmul.f32 %v1338, %v100
    %v1344 = vmul.f32 %v1337, %v105
    %v1345 = vrot.slane %v1329, 1
    %v1346 = vrot.slane %v1330, 1
    %v1347 = vrot.slane %v1331, 1
    %v1348 = vrot.slane %v1332, 1
    %v1349 = vsel %vm115, %v1347, %v1348
    %v1350 = vsel %vm115, %v1346, %v1347
    %v1351 = vsel %vm115, %v1345, %v1346
    %v1352 = vsel %vm115, %v1348, %v1345
    %v1353 = vmul.f32 %v1351, %v123
    %v1354 = vmul.f32 %v1350, %v128
    %v1355 = vmul.f32 %v1349, %v133
    %v1356 = vmul.f32 %v1352, %v138
    %v1357 = vpack.c.bf16 %v1342, %v1341
    %v1358 = vpack.c.bf16 %v1330, %v1329
    %v1359 = vpack.c.bf16 %v1354, %v1353
    %v1360 = vpack.c.bf16 %v1344, %v1343
    %v1361 = vpack.c.bf16 %v1332, %v1331
    %v1362 = vpack.c.bf16 %v1356, %v1355
    %s1363 = scalar_lea.vmem [#allocation2], 576
    %v1364 = vld [vmem:[%s1363] sm:$0xf]
    %v1365 = vld [vmem:[%s1363 + $0x4] sm:$0xf]
    %v1366 = vld [vmem:[%s1363 + $0x8] sm:$0xf]
    %v1367 = vld [vmem:[%s1363 + $0xc] sm:$0xf]
    %v1368 = vld [vmem:[%s1363 + $0x10] sm:$0xf]
    %v1369 = vld [vmem:[%s1363 + $0x14] sm:$0xf]
    %v1370 = vld [vmem:[%s1363 + $0x18] sm:$0xf]
    %v1371 = vld [vmem:[%s1363 + $0x1c] sm:$0xf]
    %v1372 = vld [vmem:[%s1363 + $0x20] sm:$0xf]
    %v1373 = vld [vmem:[%s1363 + $0x24] sm:$0xf]
    %v1374 = vld [vmem:[%s1363 + $0x28] sm:$0xf]
    %v1375 = vld [vmem:[%s1363 + $0x2c] sm:$0xf]
    %v1376 = vld [vmem:[%s1363 + $0x30] sm:$0xf]
    %v1377 = vld [vmem:[%s1363 + $0x34] sm:$0xf]
    %v1378 = vld [vmem:[%s1363 + $0x38] sm:$0xf]
    %v1379 = vld [vmem:[%s1363 + $0x3c] sm:$0xf]
    %v1380 = vld [vmem:[%s1363 + $0x40] sm:$0xf]
    %v1381 = vld [vmem:[%s1363 + $0x44] sm:$0xf]
    %v1382 = vld [vmem:[%s1363 + $0x48] sm:$0xf]
    %v1383 = vld [vmem:[%s1363 + $0x4c] sm:$0xf]
    %v1384 = vld [vmem:[%s1363 + $0x50] sm:$0xf]
    %v1385 = vld [vmem:[%s1363 + $0x54] sm:$0xf]
    %v1386 = vld [vmem:[%s1363 + $0x58] sm:$0xf]
    %v1387 = vld [vmem:[%s1363 + $0x5c] sm:$0xf]
    %v1388 = vld [vmem:[%s1363 + $0x60] sm:$0xf]
    %v1389 = vld [vmem:[%s1363 + $0x64] sm:$0xf]
    %v1390 = vld [vmem:[%s1363 + $0x68] sm:$0xf]
    %v1391 = vld [vmem:[%s1363 + $0x6c] sm:$0xf]
    %v1392 = vld [vmem:[%s1363 + $0x70] sm:$0xf]
    %v1393 = vld [vmem:[%s1363 + $0x74] sm:$0xf]
    %v1394 = vld [vmem:[%s1363 + $0x78] sm:$0xf]
    %v1395 = vld [vmem:[%s1363 + $0x7c] sm:$0xf]
    %v1396 = vld [vmem:[%s1363 + $0x80] sm:$0xf]
    %v1397 = vld [vmem:[%s1363 + $0x84] sm:$0xf]
    %v1398 = vld [vmem:[%s1363 + $0x88] sm:$0xf]
    %v1399 = vld [vmem:[%s1363 + $0x8c] sm:$0xf]
    %v1400 = vld [vmem:[%s1363 + $0x90] sm:$0xf]
    %v1401 = vld [vmem:[%s1363 + $0x94] sm:$0xf]
    %v1402 = vld [vmem:[%s1363 + $0x98] sm:$0xf]
    %v1403 = vld [vmem:[%s1363 + $0x9c] sm:$0xf]
    %v1404 = vld [vmem:[%s1363 + $0xa0] sm:$0xf]
    %v1405 = vld [vmem:[%s1363 + $0xa4] sm:$0xf]
    %v1406 = vld [vmem:[%s1363 + $0xa8] sm:$0xf]
    %v1407 = vld [vmem:[%s1363 + $0xac] sm:$0xf]
    %v1408 = vld [vmem:[%s1363 + $0xb0] sm:$0xf]
    %v1409 = vld [vmem:[%s1363 + $0xb4] sm:$0xf]
    %v1410 = vld [vmem:[%s1363 + $0xb8] sm:$0xf]
    %v1411 = vld [vmem:[%s1363 + $0xbc] sm:$0xf]
    %v1460 = vunpack.c.l.b16 %v1364
    %v1461 = vunpack.c.l.b16 %v1365
    %v1462 = vunpack.c.l.b16 %v1366
    %v1463 = vunpack.c.l.b16 %v1367
    %v1464 = vunpack.c.l.b16 %v1368
    %v1465 = vunpack.c.l.b16 %v1369
    %v1466 = vunpack.c.l.b16 %v1370
    %v1467 = vunpack.c.l.b16 %v1371
    %v1468 = vunpack.c.l.b16 %v1372
    %v1469 = vunpack.c.l.b16 %v1373
    %v1470 = vunpack.c.l.b16 %v1374
    %v1471 = vunpack.c.l.b16 %v1375
    %v1472 = vunpack.c.l.b16 %v1376
    %v1473 = vunpack.c.l.b16 %v1377
    %v1474 = vunpack.c.l.b16 %v1378
    %v1475 = vunpack.c.l.b16 %v1379
    %v1476 = vunpack.c.l.b16 %v1380
    %v1477 = vunpack.c.l.b16 %v1381
    %v1478 = vunpack.c.l.b16 %v1382
    %v1479 = vunpack.c.l.b16 %v1383
    %v1480 = vunpack.c.l.b16 %v1384
    %v1481 = vunpack.c.l.b16 %v1385
    %v1482 = vunpack.c.l.b16 %v1386
    %v1483 = vunpack.c.l.b16 %v1387
    %v1484 = vunpack.c.l.b16 %v1388
    %v1485 = vunpack.c.l.b16 %v1389
    %v1486 = vunpack.c.l.b16 %v1390
    %v1487 = vunpack.c.l.b16 %v1391
    %v1488 = vunpack.c.l.b16 %v1392
    %v1489 = vunpack.c.l.b16 %v1393
    %v1490 = vunpack.c.l.b16 %v1394
    %v1491 = vunpack.c.l.b16 %v1395
    %v1492 = vunpack.c.l.b16 %v1396
    %v1493 = vunpack.c.l.b16 %v1397
    %v1494 = vunpack.c.l.b16 %v1398
    %v1495 = vunpack.c.l.b16 %v1399
    %v1496 = vunpack.c.l.b16 %v1400
    %v1497 = vunpack.c.l.b16 %v1401
    %v1498 = vunpack.c.l.b16 %v1402
    %v1499 = vunpack.c.l.b16 %v1403
    %v1500 = vunpack.c.l.b16 %v1404
    %v1501 = vunpack.c.l.b16 %v1405
    %v1502 = vunpack.c.l.b16 %v1406
    %v1503 = vunpack.c.l.b16 %v1407
    %v1504 = vunpack.c.l.b16 %v1408
    %v1505 = vunpack.c.l.b16 %v1409
    %v1506 = vunpack.c.l.b16 %v1410
    %v1507 = vunpack.c.l.b16 %v1411
    %v1508 = vpack.c.b16 %v1461, %v1460
    %v1509 = vpack.c.b16 %v1463, %v1462
    %v1510 = vpack.c.b16 %v1465, %v1464
    %v1511 = vpack.c.b16 %v1467, %v1466
    %v1512 = vpack.c.b16 %v1469, %v1468
    %v1513 = vpack.c.b16 %v1471, %v1470
    %v1514 = vpack.c.b16 %v1473, %v1472
    %v1515 = vpack.c.b16 %v1475, %v1474
    %v1516 = vpack.c.b16 %v1477, %v1476
    %v1517 = vpack.c.b16 %v1479, %v1478
    %v1518 = vpack.c.b16 %v1481, %v1480
    %v1519 = vpack.c.b16 %v1483, %v1482
    %v1520 = vpack.c.b16 %v1485, %v1484
    %v1521 = vpack.c.b16 %v1487, %v1486
    %v1522 = vpack.c.b16 %v1489, %v1488
    %v1523 = vpack.c.b16 %v1491, %v1490
    %v1524 = vpack.c.b16 %v1493, %v1492
    %v1525 = vpack.c.b16 %v1495, %v1494
    %v1526 = vpack.c.b16 %v1497, %v1496
    %v1527 = vpack.c.b16 %v1499, %v1498
    %v1528 = vpack.c.b16 %v1501, %v1500
    %v1529 = vpack.c.b16 %v1503, %v1502
    %v1530 = vpack.c.b16 %v1505, %v1504
    %v1531 = vpack.c.b16 %v1507, %v1506
    %1556 = vmatprep.subr.bf16.mxu0 0
    %1557 = vmatpush1.bf16.msra.mxu0 %v1508
    %1558 = vmatprep.subr.bf16.mxu0 0
    %1559 = vmatpush1.bf16.msra.mxu0 %v1509
    %1560 = vmatprep.subr.bf16.mxu0 0
    %1561 = vmatpush1.bf16.msra.mxu0 %v1510
    %1562 = vmatprep.subr.bf16.mxu0 0
    %1563 = vmatpush1.bf16.msra.mxu0 %v1511
    %1564 = vmatprep.subr.bf16.mxu0 0
    %1565 = vmatpush1.bf16.msra.mxu0 %v1512
    %1566 = vmatprep.subr.bf16.mxu0 0
    %1567 = vmatpush1.bf16.msra.mxu0 %v1513
    %1568 = vmatprep.subr.bf16.mxu0 0
    %1569 = vmatpush1.bf16.msra.mxu0 %v1514
    %1570 = vmatprep.subr.bf16.mxu0 0
    %1571 = vmatpush1.bf16.msra.mxu0 %v1515
    %1572 = vmatprep.subr.bf16.mxu0 0
    %1573 = vmatpush1.bf16.msra.mxu0 %v1516
    %1574 = vmatprep.subr.bf16.mxu0 0
    %1575 = vmatpush1.bf16.msra.mxu0 %v1517
    %1576 = vmatprep.subr.bf16.mxu0 0
    %1577 = vmatpush1.bf16.msra.mxu0 %v1518
    %1578 = vmatprep.subr.bf16.mxu0 0
    %1579 = vmatpush1.bf16.msra.mxu0 %v1519
    %1580 = vmatprep.subr.bf16.mxu0 0
    %1581 = vmatpush1.bf16.msra.mxu0 %v1520
    %1582 = vmatprep.subr.bf16.mxu0 0
    %1583 = vmatpush1.bf16.msra.mxu0 %v1521
    %1584 = vmatprep.subr.bf16.mxu0 0
    %1585 = vmatpush1.bf16.msra.mxu0 %v1522
    %1586 = vmatprep.subr.bf16.mxu0 0
    %1587 = vmatpush1.bf16.msra.mxu0 %v1523
    %1588 = vmatprep.mubr.bf16.mxu0 %v1358
    %1589 = vmatmul.mubr.bf16.gmra.mrb[0].mxu0 %v1357
    %v1590 = vpop.f32.mrb[0].mxu0
    %v1591 = vadd.f32 0.0, %v1590
    %v1592 = vpop.f32.mrb[0].mxu0
    %v1593 = vpop.f32.mrb[0].mxu0
    %v1594 = vadd.f32 0.0, %v1593
    %v1595 = vpop.f32.mrb[0].mxu0
    %1596 = vmatprep.mubr.bf16.mxu0 %v1361
    %1597 = vmatmul.mubr.bf16.gmra.mrb[0].mxu0 %v1360
    %v1598 = vpop.f32.mrb[0].mxu0
    %v1599 = vadd.f32 0.0, %v1598
    %v1600 = vpop.f32.mrb[0].mxu0
    %v1601 = vpop.f32.mrb[0].mxu0
    %v1602 = vadd.f32 0.0, %v1601
    %v1603 = vpop.f32.mrb[0].mxu0
    %1604 = vdwg.mxu0
    %1605 = vmatprep.subr.bf16.mxu0 0
    %1606 = vmatpush1.bf16.msra.mxu0 %v1524
    %1607 = vmatprep.subr.bf16.mxu0 0
    %1608 = vmatpush1.bf16.msra.mxu0 %v1525
    %1609 = vmatprep.subr.bf16.mxu0 0
    %1610 = vmatpush1.bf16.msra.mxu0 %v1526
    %1611 = vmatprep.subr.bf16.mxu0 0
    %1612 = vmatpush1.bf16.msra.mxu0 %v1527
    %1613 = vmatprep.subr.bf16.mxu0 0
    %1614 = vmatpush1.bf16.msra.mxu0 %v1528
    %1615 = vmatprep.subr.bf16.mxu0 0
    %1616 = vmatpush1.bf16.msra.mxu0 %v1529
    %1617 = vmatprep.subr.bf16.mxu0 0
    %1618 = vmatpush1.bf16.msra.mxu0 %v1530
    %1619 = vmatprep.subr.bf16.mxu0 0
    %1620 = vmatpush1.bf16.msra.mxu0 %v1531
    %1621 = vmatprep.subr.bf16.mxu0 0
    %1622 = vmatpush1.bf16.msra.mxu0 0
    %1623 = vmatprep.subr.bf16.mxu0 0
    %1624 = vmatpush1.bf16.msra.mxu0 0
    %1625 = vmatprep.subr.bf16.mxu0 0
    %1626 = vmatpush1.bf16.msra.mxu0 0
    %1627 = vmatprep.subr.bf16.mxu0 0
    %1628 = vmatpush1.bf16.msra.mxu0 0
    %1629 = vmatprep.subr.bf16.mxu0 0
    %1630 = vmatpush1.bf16.msra.mxu0 0
    %1631 = vmatprep.subr.bf16.mxu0 0
    %1632 = vmatpush1.bf16.msra.mxu0 0
    %1633 = vmatprep.subr.bf16.mxu0 0
    %1634 = vmatpush1.bf16.msra.mxu0 0
    %1635 = vmatprep.subr.bf16.mxu0 0
    %1636 = vmatpush1.bf16.msra.mxu0 0
    %1637 = vmatprep.mubr.bf16.mxu0 0
    %1638 = vmatmul.mubr.bf16.gmra.mrb[0].mxu0 %v1359
    %v1639 = vpop.f32.mrb[0].mxu0
    %v1640 = vadd.f32 %v1591, %v1639
    %v1641 = vpop.f32.mrb[0].mxu0
    %v1642 = vpop.f32.mrb[0].mxu0
    %v1643 = vadd.f32 %v1594, %v1642
    %v1644 = vpop.f32.mrb[0].mxu0
    %1645 = vmatprep.mubr.bf16.mxu0 0
    %1646 = vmatmul.mubr.bf16.gmra.mrb[0].mxu0 %v1362
    %v1647 = vpop.f32.mrb[0].mxu0
    %v1648 = vadd.f32 %v1599, %v1647
    %v1649 = vpop.f32.mrb[0].mxu0
    %v1650 = vpop.f32.mrb[0].mxu0
    %v1651 = vadd.f32 %v1602, %v1650
    %v1652 = vpop.f32.mrb[0].mxu0
    %1653 = vdwg.mxu0
    %v1654 = vmax.f32 %v1640, 0.0
    %v1655 = vmax.f32 %v1643, 0.0
    %v1656 = vmax.f32 %v1648, 0.0
    %v1657 = vmax.f32 %v1651, 0.0
    %v1658 = vadd.f32 %v1654, %v1655
    %v1659 = vadd.f32 %v1658, %v1656
    %v1660 = vadd.f32 %v1659, %v1657
    %v1661 = vrot.slane %v1660, 4
    %v1662 = vadd.f32 %v1660, %v1661
    %v1663 = vrot.slane %v1662, 2
    %v1664 = vadd.f32 %v1662, %v1663
    %v1665 = vrot.slane %v1664, 1
    %v1666 = vadd.f32 %v1664, %v1665
    %v1667 = vmul.f32 %v1654, %v1654
    %v1668 = vmul.f32 %v1655, %v1655
    %v1669 = vmul.f32 %v1656, %v1656
    %v1670 = vmul.f32 %v1657, %v1657
    %v1671 = vadd.f32 %v1667, %v1668
    %v1672 = vadd.f32 %v1671, %v1669
    %v1673 = vadd.f32 %v1672, %v1670
    %v1674 = vrot.slane %v1673, 4
    %v1675 = vadd.f32 %v1673, %v1674
    %v1676 = vrot.slane %v1675, 2
    %v1677 = vadd.f32 %v1675, %v1676
    %v1678 = vrot.slane %v1677, 1
    %v1679 = vadd.f32 %v1677, %v1678
    %v1680 = vsel %vm791, %v1666, %v1679
    %1681 = vmatprep.subr.mxu0 0.0
    %1682 = vmatpush1.msra.mxu0 %v56
    %1683 = vmatprep.subr.mxu0 0.0
    %1684 = vmatpush1.msra.mxu0 %v57
    %1685 = vmatprep.subr.mxu0 0.0
    %1686 = vmatpush1.msra.mxu0 %v58
    %1687 = vmatprep.subr.mxu0 0.0
    %1688 = vmatpush1.msra.mxu0 %v59
    %1689 = vmatprep.subr.mxu0 0.0
    %1690 = vmatpush1.msra.mxu0 %v60
    %1691 = vmatprep.subr.mxu0 0.0
    %1692 = vmatpush1.msra.mxu0 %v61
    %1693 = vmatprep.subr.mxu0 0.0
    %1694 = vmatpush1.msra.mxu0 %v62
    %1695 = vmatprep.subr.mxu0 0.0
    %1696 = vmatpush1.msra.mxu0 %v63
    %1697 = vmatprep.subr.mxu0 0.0
    %1698 = vmatpush1.msra.mxu0 %v64
    %1699 = vmatprep.subr.mxu0 0.0
    %1700 = vmatpush1.msra.mxu0 %v65
    %1701 = vmatprep.subr.mxu0 0.0
    %1702 = vmatpush1.msra.mxu0 %v66
    %1703 = vmatprep.subr.mxu0 0.0
    %1704 = vmatpush1.msra.mxu0 %v67
    %1705 = vmatprep.subr.mxu0 0.0
    %1706 = vmatpush1.msra.mxu0 %v68
    %1707 = vmatprep.subr.mxu0 0.0
    %1708 = vmatpush1.msra.mxu0 %v69
    %1709 = vmatprep.subr.mxu0 0.0
    %1710 = vmatpush1.msra.mxu0 %v70
    %1711 = vmatprep.subr.mxu0 0.0
    %1712 = vmatpush1.msra.mxu0 %v71
    %1713 = vmatprep.subr.mxu0 0.0
    %1714 = vmatpush1.msra.mxu0 0.0
    %1715 = vmatprep.subr.mxu0 0.0
    %1716 = vmatpush1.msra.mxu0 0.0
    %1717 = vmatprep.subr.mxu0 0.0
    %1718 = vmatpush1.msra.mxu0 0.0
    %1719 = vmatprep.subr.mxu0 0.0
    %1720 = vmatpush1.msra.mxu0 0.0
    %1721 = vmatprep.subr.mxu0 0.0
    %1722 = vmatpush1.msra.mxu0 0.0
    %1723 = vmatprep.subr.mxu0 0.0
    %1724 = vmatpush1.msra.mxu0 0.0
    %1725 = vmatprep.subr.mxu0 0.0
    %1726 = vmatpush1.msra.mxu0 0.0
    %1727 = vmatprep.subr.mxu0 0.0
    %1728 = vmatpush1.msra.mxu0 0.0
    %1729 = vmatprep.subr.mxu0 0.0
    %1730 = vmatpush1.msra.mxu0 0.0
    %1731 = vmatprep.subr.mxu0 0.0
    %1732 = vmatpush1.msra.mxu0 0.0
    %1733 = vmatprep.subr.mxu0 0.0
    %1734 = vmatpush1.msra.mxu0 0.0
    %1735 = vmatprep.subr.mxu0 0.0
    %1736 = vmatpush1.msra.mxu0 0.0
    %1737 = vmatprep.subr.mxu0 0.0
    %1738 = vmatpush1.msra.mxu0 0.0
    %1739 = vmatprep.subr.mxu0 0.0
    %1740 = vmatpush1.msra.mxu0 0.0
    %1741 = vmatprep.subr.mxu0 0.0
    %1742 = vmatpush1.msra.mxu0 0.0
    %1743 = vmatprep.subr.mxu0 0.0
    %1744 = vmatpush1.msra.mxu0 0.0
    %1745 = vmatprep.mubr.f32.mxu0 0.0
    %1746 = vmatmul.mubr.f32.gmra.mrb[0].mxu0 %v1680
    %v1747 = vpop.f32.mrb[0].mxu0
    %v1748 = vadd.f32 0.0, %v1747
    %v1749 = vpop.f32.mrb[0].mxu0
    %1750 = vdwg.mxu0
    %v1751 = vmul.f32 %v1748, 0.001953125
    %v1752 = vmul.f32 %v1751, %v1751
    %v1754 = vrot.slane %v1752, 7
    %v1756 = vsub.f32 %v1751, %v1754
    %v1757 = vlaneseq
    %v1758 = vshrl.u32 %v1757, 7
    %v1759 = vsub.s32 0, %v1758
    %v1760 = vrot.slane %v1751, %v1759
    %v1761 = vsub.f32 %v1654, %v1760
    %v1762 = vsub.f32 %v1655, %v1760
    %v1763 = vsub.f32 %v1656, %v1760
    %v1764 = vsub.f32 %v1657, %v1760
    %v1765 = vadd.f32 %v1756, 1e-05
    %v1766 = vrsqrt.pop %v1765
    %v1767 = vlaneseq
    %v1768 = vshrl.u32 %v1767, 7
    %v1769 = vsub.s32 1, %v1768
    %v1770 = vrot.slane %v1766, %v1769
    %v1771 = vmul.f32 %v1761, %v1770
    %v1772 = vmul.f32 %v1762, %v1770
    %v1773 = vmul.f32 %v1763, %v1770
    %v1774 = vmul.f32 %v1764, %v1770
    %v1775 = vrot.slane %v1771, 7
    %v1776 = vrot.slane %v1772, 7
    %v1777 = vrot.slane %v1773, 7
    %v1778 = vrot.slane %v1774, 7
    %v1779 = vsel %vm82, %v1777, %v1778
    %v1780 = vsel %vm82, %v1776, %v1777
    %v1781 = vsel %vm82, %v1775, %v1776
    %v1782 = vsel %vm82, %v1778, %v1775
    %v1783 = vmul.f32 %v1782, %v90
    %v1784 = vmul.f32 %v1781, %v95
    %v1785 = vmul.f32 %v1780, %v100
    %v1786 = vmul.f32 %v1779, %v105
    %v1787 = vrot.slane %v1771, 1
    %v1788 = vrot.slane %v1772, 1
    %v1789 = vrot.slane %v1773, 1
    %v1790 = vrot.slane %v1774, 1
    %v1791 = vsel %vm115, %v1789, %v1790
    %v1792 = vsel %vm115, %v1788, %v1789
    %v1793 = vsel %vm115, %v1787, %v1788
    %v1794 = vsel %vm115, %v1790, %v1787
    %v1795 = vmul.f32 %v1793, %v123
    %v1796 = vmul.f32 %v1792, %v128
    %v1797 = vmul.f32 %v1791, %v133
    %v1798 = vmul.f32 %v1794, %v138
    %v1799 = vpack.c.bf16 %v1784, %v1783
    %v1800 = vpack.c.bf16 %v1772, %v1771
    %v1801 = vpack.c.bf16 %v1796, %v1795
    %v1802 = vpack.c.bf16 %v1786, %v1785
    %v1803 = vpack.c.bf16 %v1774, %v1773
    %v1804 = vpack.c.bf16 %v1798, %v1797
    %s1805 = scalar_lea.vmem [#allocation2], 768
    %v1806 = vld [vmem:[%s1805] sm:$0xf]
    %v1807 = vld [vmem:[%s1805 + $0x4] sm:$0xf]
    %v1808 = vld [vmem:[%s1805 + $0x8] sm:$0xf]
    %v1809 = vld [vmem:[%s1805 + $0xc] sm:$0xf]
    %v1810 = vld [vmem:[%s1805 + $0x10] sm:$0xf]
    %v1811 = vld [vmem:[%s1805 + $0x14] sm:$0xf]
    %v1812 = vld [vmem:[%s1805 + $0x18] sm:$0xf]
    %v1813 = vld [vmem:[%s1805 + $0x1c] sm:$0xf]
    %v1814 = vld [vmem:[%s1805 + $0x20] sm:$0xf]
    %v1815 = vld [vmem:[%s1805 + $0x24] sm:$0xf]
    %v1816 = vld [vmem:[%s1805 + $0x28] sm:$0xf]
    %v1817 = vld [vmem:[%s1805 + $0x2c] sm:$0xf]
    %v1818 = vld [vmem:[%s1805 + $0x30] sm:$0xf]
    %v1819 = vld [vmem:[%s1805 + $0x34] sm:$0xf]
    %v1820 = vld [vmem:[%s1805 + $0x38] sm:$0xf]
    %v1821 = vld [vmem:[%s1805 + $0x3c] sm:$0xf]
    %v1822 = vld [vmem:[%s1805 + $0x40] sm:$0xf]
    %v1823 = vld [vmem:[%s1805 + $0x44] sm:$0xf]
    %v1824 = vld [vmem:[%s1805 + $0x48] sm:$0xf]
    %v1825 = vld [vmem:[%s1805 + $0x4c] sm:$0xf]
    %v1826 = vld [vmem:[%s1805 + $0x50] sm:$0xf]
    %v1827 = vld [vmem:[%s1805 + $0x54] sm:$0xf]
    %v1828 = vld [vmem:[%s1805 + $0x58] sm:$0xf]
    %v1829 = vld [vmem:[%s1805 + $0x5c] sm:$0xf]
    %v1830 = vld [vmem:[%s1805 + $0x60] sm:$0xf]
    %v1831 = vld [vmem:[%s1805 + $0x64] sm:$0xf]
    %v1832 = vld [vmem:[%s1805 + $0x68] sm:$0xf]
    %v1833 = vld [vmem:[%s1805 + $0x6c] sm:$0xf]
    %v1834 = vld [vmem:[%s1805 + $0x70] sm:$0xf]
    %v1835 = vld [vmem:[%s1805 + $0x74] sm:$0xf]
    %v1836 = vld [vmem:[%s1805 + $0x78] sm:$0xf]
    %v1837 = vld [vmem:[%s1805 + $0x7c] sm:$0xf]
    %v1838 = vld [vmem:[%s1805 + $0x80] sm:$0xf]
    %v1839 = vld [vmem:[%s1805 + $0x84] sm:$0xf]
    %v1840 = vld [vmem:[%s1805 + $0x88] sm:$0xf]
    %v1841 = vld [vmem:[%s1805 + $0x8c] sm:$0xf]
    %v1842 = vld [vmem:[%s1805 + $0x90] sm:$0xf]
    %v1843 = vld [vmem:[%s1805 + $0x94] sm:$0xf]
    %v1844 = vld [vmem:[%s1805 + $0x98] sm:$0xf]
    %v1845 = vld [vmem:[%s1805 + $0x9c] sm:$0xf]
    %v1846 = vld [vmem:[%s1805 + $0xa0] sm:$0xf]
    %v1847 = vld [vmem:[%s1805 + $0xa4] sm:$0xf]
    %v1848 = vld [vmem:[%s1805 + $0xa8] sm:$0xf]
    %v1849 = vld [vmem:[%s1805 + $0xac] sm:$0xf]
    %v1850 = vld [vmem:[%s1805 + $0xb0] sm:$0xf]
    %v1851 = vld [vmem:[%s1805 + $0xb4] sm:$0xf]
    %v1852 = vld [vmem:[%s1805 + $0xb8] sm:$0xf]
    %v1853 = vld [vmem:[%s1805 + $0xbc] sm:$0xf]
    %v1902 = vunpack.c.l.b16 %v1806
    %v1903 = vunpack.c.l.b16 %v1807
    %v1904 = vunpack.c.l.b16 %v1808
    %v1905 = vunpack.c.l.b16 %v1809
    %v1906 = vunpack.c.l.b16 %v1810
    %v1907 = vunpack.c.l.b16 %v1811
    %v1908 = vunpack.c.l.b16 %v1812
    %v1909 = vunpack.c.l.b16 %v1813
    %v1910 = vunpack.c.l.b16 %v1814
    %v1911 = vunpack.c.l.b16 %v1815
    %v1912 = vunpack.c.l.b16 %v1816
    %v1913 = vunpack.c.l.b16 %v1817
    %v1914 = vunpack.c.l.b16 %v1818
    %v1915 = vunpack.c.l.b16 %v1819
    %v1916 = vunpack.c.l.b16 %v1820
    %v1917 = vunpack.c.l.b16 %v1821
    %v1918 = vunpack.c.l.b16 %v1822
    %v1919 = vunpack.c.l.b16 %v1823
    %v1920 = vunpack.c.l.b16 %v1824
    %v1921 = vunpack.c.l.b16 %v1825
    %v1922 = vunpack.c.l.b16 %v1826
    %v1923 = vunpack.c.l.b16 %v1827
    %v1924 = vunpack.c.l.b16 %v1828
    %v1925 = vunpack.c.l.b16 %v1829
    %v1926 = vunpack.c.l.b16 %v1830
    %v1927 = vunpack.c.l.b16 %v1831
    %v1928 = vunpack.c.l.b16 %v1832
    %v1929 = vunpack.c.l.b16 %v1833
    %v1930 = vunpack.c.l.b16 %v1834
    %v1931 = vunpack.c.l.b16 %v1835
    %v1932 = vunpack.c.l.b16 %v1836
    %v1933 = vunpack.c.l.b16 %v1837
    %v1934 = vunpack.c.l.b16 %v1838
    %v1935 = vunpack.c.l.b16 %v1839
    %v1936 = vunpack.c.l.b16 %v1840
    %v1937 = vunpack.c.l.b16 %v1841
    %v1938 = vunpack.c.l.b16 %v1842
    %v1939 = vunpack.c.l.b16 %v1843
    %v1940 = vunpack.c.l.b16 %v1844
    %v1941 = vunpack.c.l.b16 %v1845
    %v1942 = vunpack.c.l.b16 %v1846
    %v1943 = vunpack.c.l.b16 %v1847
    %v1944 = vunpack.c.l.b16 %v1848
    %v1945 = vunpack.c.l.b16 %v1849
    %v1946 = vunpack.c.l.b16 %v1850
    %v1947 = vunpack.c.l.b16 %v1851
    %v1948 = vunpack.c.l.b16 %v1852
    %v1949 = vunpack.c.l.b16 %v1853
    %v1950 = vpack.c.b16 %v1903, %v1902
    %v1951 = vpack.c.b16 %v1905, %v1904
    %v1952 = vpack.c.b16 %v1907, %v1906
    %v1953 = vpack.c.b16 %v1909, %v1908
    %v1954 = vpack.c.b16 %v1911, %v1910
    %v1955 = vpack.c.b16 %v1913, %v1912
    %v1956 = vpack.c.b16 %v1915, %v1914
    %v1957 = vpack.c.b16 %v1917, %v1916
    %v1958 = vpack.c.b16 %v1919, %v1918
    %v1959 = vpack.c.b16 %v1921, %v1920
    %v1960 = vpack.c.b16 %v1923, %v1922
    %v1961 = vpack.c.b16 %v1925, %v1924
    %v1962 = vpack.c.b16 %v1927, %v1926
    %v1963 = vpack.c.b16 %v1929, %v1928
    %v1964 = vpack.c.b16 %v1931, %v1930
    %v1965 = vpack.c.b16 %v1933, %v1932
    %v1966 = vpack.c.b16 %v1935, %v1934
    %v1967 = vpack.c.b16 %v1937, %v1936
    %v1968 = vpack.c.b16 %v1939, %v1938
    %v1969 = vpack.c.b16 %v1941, %v1940
    %v1970 = vpack.c.b16 %v1943, %v1942
    %v1971 = vpack.c.b16 %v1945, %v1944
    %v1972 = vpack.c.b16 %v1947, %v1946
    %v1973 = vpack.c.b16 %v1949, %v1948
    %1998 = vmatprep.subr.bf16.mxu0 0
    %1999 = vmatpush1.bf16.msra.mxu0 %v1950
    %2000 = vmatprep.subr.bf16.mxu0 0
    %2001 = vmatpush1.bf16.msra.mxu0 %v1951
    %2002 = vmatprep.subr.bf16.mxu0 0
    %2003 = vmatpush1.bf16.msra.mxu0 %v1952
    %2004 = vmatprep.subr.bf16.mxu0 0
    %2005 = vmatpush1.bf16.msra.mxu0 %v1953
    %2006 = vmatprep.subr.bf16.mxu0 0
    %2007 = vmatpush1.bf16.msra.mxu0 %v1954
    %2008 = vmatprep.subr.bf16.mxu0 0
    %2009 = vmatpush1.bf16.msra.mxu0 %v1955
    %2010 = vmatprep.subr.bf16.mxu0 0
    %2011 = vmatpush1.bf16.msra.mxu0 %v1956
    %2012 = vmatprep.subr.bf16.mxu0 0
    %2013 = vmatpush1.bf16.msra.mxu0 %v1957
    %2014 = vmatprep.subr.bf16.mxu0 0
    %2015 = vmatpush1.bf16.msra.mxu0 %v1958
    %2016 = vmatprep.subr.bf16.mxu0 0
    %2017 = vmatpush1.bf16.msra.mxu0 %v1959
    %2018 = vmatprep.subr.bf16.mxu0 0
    %2019 = vmatpush1.bf16.msra.mxu0 %v1960
    %2020 = vmatprep.subr.bf16.mxu0 0
    %2021 = vmatpush1.bf16.msra.mxu0 %v1961
    %2022 = vmatprep.subr.bf16.mxu0 0
    %2023 = vmatpush1.bf16.msra.mxu0 %v1962
    %2024 = vmatprep.subr.bf16.mxu0 0
    %2025 = vmatpush1.bf16.msra.mxu0 %v1963
    %2026 = vmatprep.subr.bf16.mxu0 0
    %2027 = vmatpush1.bf16.msra.mxu0 %v1964
    %2028 = vmatprep.subr.bf16.mxu0 0
    %2029 = vmatpush1.bf16.msra.mxu0 %v1965
    %2030 = vmatprep.mubr.bf16.mxu0 %v1800
    %2031 = vmatmul.mubr.bf16.gmra.mrb[0].mxu0 %v1799
    %v2032 = vpop.f32.mrb[0].mxu0
    %v2033 = vadd.f32 0.0, %v2032
    %v2034 = vpop.f32.mrb[0].mxu0
    %v2035 = vpop.f32.mrb[0].mxu0
    %v2036 = vadd.f32 0.0, %v2035
    %v2037 = vpop.f32.mrb[0].mxu0
    %2038 = vmatprep.mubr.bf16.mxu0 %v1803
    %2039 = vmatmul.mubr.bf16.gmra.mrb[0].mxu0 %v1802
    %v2040 = vpop.f32.mrb[0].mxu0
    %v2041 = vadd.f32 0.0, %v2040
    %v2042 = vpop.f32.mrb[0].mxu0
    %v2043 = vpop.f32.mrb[0].mxu0
    %v2044 = vadd.f32 0.0, %v2043
    %v2045 = vpop.f32.mrb[0].mxu0
    %2046 = vdwg.mxu0
    %2047 = vmatprep.subr.bf16.mxu0 0
    %2048 = vmatpush1.bf16.msra.mxu0 %v1966
    %2049 = vmatprep.subr.bf16.mxu0 0
    %2050 = vmatpush1.bf16.msra.mxu0 %v1967
    %2051 = vmatprep.subr.bf16.mxu0 0
    %2052 = vmatpush1.bf16.msra.mxu0 %v1968
    %2053 = vmatprep.subr.bf16.mxu0 0
    %2054 = vmatpush1.bf16.msra.mxu0 %v1969
    %2055 = vmatprep.subr.bf16.mxu0 0
    %2056 = vmatpush1.bf16.msra.mxu0 %v1970
    %2057 = vmatprep.subr.bf16.mxu0 0
    %2058 = vmatpush1.bf16.msra.mxu0 %v1971
    %2059 = vmatprep.subr.bf16.mxu0 0
    %2060 = vmatpush1.bf16.msra.mxu0 %v1972
    %2061 = vmatprep.subr.bf16.mxu0 0
    %2062 = vmatpush1.bf16.msra.mxu0 %v1973
    %2063 = vmatprep.subr.bf16.mxu0 0
    %2064 = vmatpush1.bf16.msra.mxu0 0
    %2065 = vmatprep.subr.bf16.mxu0 0
    %2066 = vmatpush1.bf16.msra.mxu0 0
    %2067 = vmatprep.subr.bf16.mxu0 0
    %2068 = vmatpush1.bf16.msra.mxu0 0
    %2069 = vmatprep.subr.bf16.mxu0 0
    %2070 = vmatpush1.bf16.msra.mxu0 0
    %2071 = vmatprep.subr.bf16.mxu0 0
    %2072 = vmatpush1.bf16.msra.mxu0 0
    %2073 = vmatprep.subr.bf16.mxu0 0
    %2074 = vmatpush1.bf16.msra.mxu0 0
    %2075 = vmatprep.subr.bf16.mxu0 0
    %2076 = vmatpush1.bf16.msra.mxu0 0
    %2077 = vmatprep.subr.bf16.mxu0 0
    %2078 = vmatpush1.bf16.msra.mxu0 0
    %2079 = vmatprep.mubr.bf16.mxu0 0
    %2080 = vmatmul.mubr.bf16.gmra.mrb[0].mxu0 %v1801
    %v2081 = vpop.f32.mrb[0].mxu0
    %v2082 = vadd.f32 %v2033, %v2081
    %v2083 = vpop.f32.mrb[0].mxu0
    %v2084 = vpop.f32.mrb[0].mxu0
    %v2085 = vadd.f32 %v2036, %v2084
    %v2086 = vpop.f32.mrb[0].mxu0
    %2087 = vmatprep.mubr.bf16.mxu0 0
    %2088 = vmatmul.mubr.bf16.gmra.mrb[0].mxu0 %v1804
    %v2089 = vpop.f32.mrb[0].mxu0
    %v2090 = vadd.f32 %v2041, %v2089
    %v2091 = vpop.f32.mrb[0].mxu0
    %v2092 = vpop.f32.mrb[0].mxu0
    %v2093 = vadd.f32 %v2044, %v2092
    %v2094 = vpop.f32.mrb[0].mxu0
    %2095 = vdwg.mxu0
    %v2096 = vmax.f32 %v2082, 0.0
    %v2097 = vmax.f32 %v2085, 0.0
    %v2098 = vmax.f32 %v2090, 0.0
    %v2099 = vmax.f32 %v2093, 0.0
    %v2100 = vadd.f32 %v2096, %v1212
    %v2101 = vadd.f32 %v2097, %v1213
    %v2102 = vadd.f32 %v2098, %v1214
    %v2103 = vadd.f32 %v2099, %v1215
    %v2104 = vadd.f32 %v2100, %v2101
    %v2105 = vadd.f32 %v2104, %v2102
    %v2106 = vadd.f32 %v2105, %v2103
    %v2107 = vrot.slane %v2106, 4
    %v2108 = vadd.f32 %v2106, %v2107
    %v2109 = vrot.slane %v2108, 2
    %v2110 = vadd.f32 %v2108, %v2109
    %v2111 = vrot.slane %v2110, 1
    %v2112 = vadd.f32 %v2110, %v2111
    %v2113 = vmul.f32 %v2100, %v2100
    %v2114 = vmul.f32 %v2101, %v2101
    %v2115 = vmul.f32 %v2102, %v2102
    %v2116 = vmul.f32 %v2103, %v2103
    %v2117 = vadd.f32 %v2113, %v2114
    %v2118 = vadd.f32 %v2117, %v2115
    %v2119 = vadd.f32 %v2118, %v2116
    %v2120 = vrot.slane %v2119, 4
    %v2121 = vadd.f32 %v2119, %v2120
    %v2122 = vrot.slane %v2121, 2
    %v2123 = vadd.f32 %v2121, %v2122
    %v2124 = vrot.slane %v2123, 1
    %v2125 = vadd.f32 %v2123, %v2124
    %v2126 = vsel %vm791, %v2112, %v2125
    %2127 = vmatprep.subr.mxu0 0.0
    %2128 = vmatpush1.msra.mxu0 %v56
    %2129 = vmatprep.subr.mxu0 0.0
    %2130 = vmatpush1.msra.mxu0 %v57
    %2131 = vmatprep.subr.mxu0 0.0
    %2132 = vmatpush1.msra.mxu0 %v58
    %2133 = vmatprep.subr.mxu0 0.0
    %2134 = vmatpush1.msra.mxu0 %v59
    %2135 = vmatprep.subr.mxu0 0.0
    %2136 = vmatpush1.msra.mxu0 %v60
    %2137 = vmatprep.subr.mxu0 0.0
    %2138 = vmatpush1.msra.mxu0 %v61
    %2139 = vmatprep.subr.mxu0 0.0
    %2140 = vmatpush1.msra.mxu0 %v62
    %2141 = vmatprep.subr.mxu0 0.0
    %2142 = vmatpush1.msra.mxu0 %v63
    %2143 = vmatprep.subr.mxu0 0.0
    %2144 = vmatpush1.msra.mxu0 %v64
    %2145 = vmatprep.subr.mxu0 0.0
    %2146 = vmatpush1.msra.mxu0 %v65
    %2147 = vmatprep.subr.mxu0 0.0
    %2148 = vmatpush1.msra.mxu0 %v66
    %2149 = vmatprep.subr.mxu0 0.0
    %2150 = vmatpush1.msra.mxu0 %v67
    %2151 = vmatprep.subr.mxu0 0.0
    %2152 = vmatpush1.msra.mxu0 %v68
    %2153 = vmatprep.subr.mxu0 0.0
    %2154 = vmatpush1.msra.mxu0 %v69
    %2155 = vmatprep.subr.mxu0 0.0
    %2156 = vmatpush1.msra.mxu0 %v70
    %2157 = vmatprep.subr.mxu0 0.0
    %2158 = vmatpush1.msra.mxu0 %v71
    %2159 = vmatprep.subr.mxu0 0.0
    %2160 = vmatpush1.msra.mxu0 0.0
    %2161 = vmatprep.subr.mxu0 0.0
    %2162 = vmatpush1.msra.mxu0 0.0
    %2163 = vmatprep.subr.mxu0 0.0
    %2164 = vmatpush1.msra.mxu0 0.0
    %2165 = vmatprep.subr.mxu0 0.0
    %2166 = vmatpush1.msra.mxu0 0.0
    %2167 = vmatprep.subr.mxu0 0.0
    %2168 = vmatpush1.msra.mxu0 0.0
    %2169 = vmatprep.subr.mxu0 0.0
    %2170 = vmatpush1.msra.mxu0 0.0
    %2171 = vmatprep.subr.mxu0 0.0
    %2172 = vmatpush1.msra.mxu0 0.0
    %2173 = vmatprep.subr.mxu0 0.0
    %2174 = vmatpush1.msra.mxu0 0.0
    %2175 = vmatprep.subr.mxu0 0.0
    %2176 = vmatpush1.msra.mxu0 0.0
    %2177 = vmatprep.subr.mxu0 0.0
    %2178 = vmatpush1.msra.mxu0 0.0
    %2179 = vmatprep.subr.mxu0 0.0
    %2180 = vmatpush1.msra.mxu0 0.0
    %2181 = vmatprep.subr.mxu0 0.0
    %2182 = vmatpush1.msra.mxu0 0.0
    %2183 = vmatprep.subr.mxu0 0.0
    %2184 = vmatpush1.msra.mxu0 0.0
    %2185 = vmatprep.subr.mxu0 0.0
    %2186 = vmatpush1.msra.mxu0 0.0
    %2187 = vmatprep.subr.mxu0 0.0
    %2188 = vmatpush1.msra.mxu0 0.0
    %2189 = vmatprep.subr.mxu0 0.0
    %2190 = vmatpush1.msra.mxu0 0.0
    %2191 = vmatprep.mubr.f32.mxu0 0.0
    %2192 = vmatmul.mubr.f32.gmra.mrb[0].mxu0 %v2126
    %v2193 = vpop.f32.mrb[0].mxu0
    %v2194 = vadd.f32 0.0, %v2193
    %v2195 = vpop.f32.mrb[0].mxu0
    %2196 = vdwg.mxu0
    %v2197 = vmul.f32 %v2194, 0.001953125
    %v2198 = vmul.f32 %v2197, %v2197
    %v2200 = vrot.slane %v2198, 7
    %v2202 = vsub.f32 %v2197, %v2200
    %v2203 = vlaneseq
    %v2204 = vshrl.u32 %v2203, 7
    %v2205 = vsub.s32 0, %v2204
    %v2206 = vrot.slane %v2197, %v2205
    %v2207 = vsub.f32 %v2100, %v2206
    %v2208 = vsub.f32 %v2101, %v2206
    %v2209 = vsub.f32 %v2102, %v2206
    %v2210 = vsub.f32 %v2103, %v2206
    %v2211 = vadd.f32 %v2202, 1e-05
    %v2212 = vrsqrt.pop %v2211
    %v2213 = vlaneseq
    %v2214 = vshrl.u32 %v2213, 7
    %v2215 = vsub.s32 1, %v2214
    %v2216 = vrot.slane %v2212, %v2215
    %v2217 = vmul.f32 %v2207, %v2216
    %v2218 = vmul.f32 %v2208, %v2216
    %v2219 = vmul.f32 %v2209, %v2216
    %v2220 = vmul.f32 %v2210, %v2216
    %v2221 = vadd.f32 %v2217, %v2218
    %v2222 = vrot.slane %v2221, 4
    %v2223 = vadd.f32 %v2221, %v2222
    %v2224 = vrot.slane %v2223, 2
    %v2225 = vadd.f32 %v2223, %v2224
    %v2226 = vrot.slane %v2225, 1
    %v2227 = vadd.f32 %v2225, %v2226
    %v2228 = vadd.f32 %v2219, %v2220
    %v2229 = vrot.slane %v2228, 4
    %v2230 = vadd.f32 %v2228, %v2229
    %v2231 = vrot.slane %v2230, 2
    %v2232 = vadd.f32 %v2230, %v2231
    %v2233 = vrot.slane %v2232, 1
    %v2234 = vadd.f32 %v2232, %v2233
    %v2235 = vld [vmem:[%s3] sm:$0xff]
    %v2236 = vld [vmem:[%s3 + $0x8] sm:$0xff]
    %v2237 = vld [vmem:[%s3 + $0x10] sm:$0xff]
    %v2238 = vld [vmem:[%s3 + $0x18] sm:$0xff]
    %v2239 = vld [vmem:[%s3 + $0x20] sm:$0xff]
    %v2240 = vld [vmem:[%s3 + $0x28] sm:$0xff]
    %v2241 = vld [vmem:[%s3 + $0x30] sm:$0xff]
    %v2242 = vld [vmem:[%s3 + $0x38] sm:$0xff]
    %v2243 = vld [vmem:[%s3 + $0x40] sm:$0xff]
    %v2244 = vld [vmem:[%s3 + $0x48] sm:$0xff]
    %v2245 = vld [vmem:[%s3 + $0x50] sm:$0xff]
    %v2246 = vld [vmem:[%s3 + $0x58] sm:$0xff]
    %v2247 = vld [vmem:[%s3 + $0x60] sm:$0xff]
    %v2248 = vld [vmem:[%s3 + $0x68] sm:$0xff]
    %v2249 = vld [vmem:[%s3 + $0x70] sm:$0xff]
    %v2250 = vld [vmem:[%s3 + $0x78] sm:$0xff]
    %vm2253 = vcmask 1041409
    %v2254 = vsel %vm2253, %v2234, %v2227
    %2256 = vmatprep.subr.mxu0 0.0
    %2257 = vmatpush1.msra.mxu0 %v2235
    %2258 = vmatprep.subr.mxu0 0.0
    %2259 = vmatpush1.msra.mxu0 %v2236
    %2260 = vmatprep.subr.mxu0 0.0
    %2261 = vmatpush1.msra.mxu0 %v2237
    %2262 = vmatprep.subr.mxu0 0.0
    %2263 = vmatpush1.msra.mxu0 %v2238
    %2264 = vmatprep.subr.mxu0 0.0
    %2265 = vmatpush1.msra.mxu0 %v2239
    %2266 = vmatprep.subr.mxu0 0.0
    %2267 = vmatpush1.msra.mxu0 %v2240
    %2268 = vmatprep.subr.mxu0 0.0
    %2269 = vmatpush1.msra.mxu0 %v2241
    %2270 = vmatprep.subr.mxu0 0.0
    %2271 = vmatpush1.msra.mxu0 %v2242
    %2272 = vmatprep.subr.mxu0 0.0
    %2273 = vmatpush1.msra.mxu0 %v2243
    %2274 = vmatprep.subr.mxu0 0.0
    %2275 = vmatpush1.msra.mxu0 %v2244
    %2276 = vmatprep.subr.mxu0 0.0
    %2277 = vmatpush1.msra.mxu0 %v2245
    %2278 = vmatprep.subr.mxu0 0.0
    %2279 = vmatpush1.msra.mxu0 %v2246
    %2280 = vmatprep.subr.mxu0 0.0
    %2281 = vmatpush1.msra.mxu0 %v2247
    %2282 = vmatprep.subr.mxu0 0.0
    %2283 = vmatpush1.msra.mxu0 %v2248
    %2284 = vmatprep.subr.mxu0 0.0
    %2285 = vmatpush1.msra.mxu0 %v2249
    %2286 = vmatprep.subr.mxu0 0.0
    %2287 = vmatpush1.msra.mxu0 %v2250
    %2288 = vmatprep.subr.mxu0 0.0
    %2289 = vmatpush1.msra.mxu0 0.0
    %2290 = vmatprep.subr.mxu0 0.0
    %2291 = vmatpush1.msra.mxu0 0.0
    %2292 = vmatprep.subr.mxu0 0.0
    %2293 = vmatpush1.msra.mxu0 0.0
    %2294 = vmatprep.subr.mxu0 0.0
    %2295 = vmatpush1.msra.mxu0 0.0
    %2296 = vmatprep.subr.mxu0 0.0
    %2297 = vmatpush1.msra.mxu0 0.0
    %2298 = vmatprep.subr.mxu0 0.0
    %2299 = vmatpush1.msra.mxu0 0.0
    %2300 = vmatprep.subr.mxu0 0.0
    %2301 = vmatpush1.msra.mxu0 0.0
    %2302 = vmatprep.subr.mxu0 0.0
    %2303 = vmatpush1.msra.mxu0 0.0
    %2304 = vmatprep.subr.mxu0 0.0
    %2305 = vmatpush1.msra.mxu0 0.0
    %2306 = vmatprep.subr.mxu0 0.0
    %2307 = vmatpush1.msra.mxu0 0.0
    %2308 = vmatprep.subr.mxu0 0.0
    %2309 = vmatpush1.msra.mxu0 0.0
    %2310 = vmatprep.subr.mxu0 0.0
    %2311 = vmatpush1.msra.mxu0 0.0
    %2312 = vmatprep.subr.mxu0 0.0
    %2313 = vmatpush1.msra.mxu0 0.0
    %2314 = vmatprep.subr.mxu0 0.0
    %2315 = vmatpush1.msra.mxu0 0.0
    %2316 = vmatprep.subr.mxu0 0.0
    %2317 = vmatpush1.msra.mxu0 0.0
    %2318 = vmatprep.subr.mxu0 0.0
    %2319 = vmatpush1.msra.mxu0 0.0
    %2320 = vmatprep.mubr.f32.mxu0 0.0
    %2321 = vmatmul.mubr.f32.gmra.mrb[0].mxu0 %v2254
    %v2322 = vpop.f32.mrb[0].mxu0
    %v2323 = vadd.f32 0.0, %v2322
    %v2324 = vpop.f32.mrb[0].mxu0
    %2325 = vdwg.mxu0
    %v2326 = vmul.f32 %v2323, 0.00390625
    %v2327 = vld [vmem:[%s6] sm:$0xff]
    %v2328 = vld [vmem:[%s7] sm:$0x1]
    %v2330 = vlaneseq
    %v2331 = vshrl.u32 %v2330, 7
    %v2332 = vsub.s32 0, %v2331
    %v2333 = vrot.slane %v2328, %v2332
    %vm2335 = vcmask 64512
    %v2337 = vsel %vm2335, %v2326, 0
    %2339 = vmatprep.subr.mxu0 0.0
    %2340 = vmatpush1.msra.mxu0 %v2327
    %2341 = vmatprep.subr.mxu0 0.0
    %2342 = vmatpush1.msra.mxu0 0.0
    %2343 = vmatprep.subr.mxu0 0.0
    %2344 = vmatpush1.msra.mxu0 0.0
    %2345 = vmatprep.subr.mxu0 0.0
    %2346 = vmatpush1.msra.mxu0 0.0
    %2347 = vmatprep.subr.mxu0 0.0
    %2348 = vmatpush1.msra.mxu0 0.0
    %2349 = vmatprep.subr.mxu0 0.0
    %2350 = vmatpush1.msra.mxu0 0.0
    %2351 = vmatprep.subr.mxu0 0.0
    %2352 = vmatpush1.msra.mxu0 0.0
    %2353 = vmatprep.subr.mxu0 0.0
    %2354 = vmatpush1.msra.mxu0 0.0
    %2355 = vmatprep.subr.mxu0 0.0
    %2356 = vmatpush1.msra.mxu0 0.0
    %2357 = vmatprep.subr.mxu0 0.0
    %2358 = vmatpush1.msra.mxu0 0.0
    %2359 = vmatprep.subr.mxu0 0.0
    %2360 = vmatpush1.msra.mxu0 0.0
    %2361 = vmatprep.subr.mxu0 0.0
    %2362 = vmatpush1.msra.mxu0 0.0
    %2363 = vmatprep.subr.mxu0 0.0
    %2364 = vmatpush1.msra.mxu0 0.0
    %2365 = vmatprep.subr.mxu0 0.0
    %2366 = vmatpush1.msra.mxu0 0.0
    %2367 = vmatprep.subr.mxu0 0.0
    %2368 = vmatpush1.msra.mxu0 0.0
    %2369 = vmatprep.subr.mxu0 0.0
    %2370 = vmatpush1.msra.mxu0 0.0
    %2371 = vmatprep.subr.mxu0 0.0
    %2372 = vmatpush1.msra.mxu0 0.0
    %2373 = vmatprep.subr.mxu0 0.0
    %2374 = vmatpush1.msra.mxu0 0.0
    %2375 = vmatprep.subr.mxu0 0.0
    %2376 = vmatpush1.msra.mxu0 0.0
    %2377 = vmatprep.subr.mxu0 0.0
    %2378 = vmatpush1.msra.mxu0 0.0
    %2379 = vmatprep.subr.mxu0 0.0
    %2380 = vmatpush1.msra.mxu0 0.0
    %2381 = vmatprep.subr.mxu0 0.0
    %2382 = vmatpush1.msra.mxu0 0.0
    %2383 = vmatprep.subr.mxu0 0.0
    %2384 = vmatpush1.msra.mxu0 0.0
    %2385 = vmatprep.subr.mxu0 0.0
    %2386 = vmatpush1.msra.mxu0 0.0
    %2387 = vmatprep.subr.mxu0 0.0
    %2388 = vmatpush1.msra.mxu0 0.0
    %2389 = vmatprep.subr.mxu0 0.0
    %2390 = vmatpush1.msra.mxu0 0.0
    %2391 = vmatprep.subr.mxu0 0.0
    %2392 = vmatpush1.msra.mxu0 0.0
    %2393 = vmatprep.subr.mxu0 0.0
    %2394 = vmatpush1.msra.mxu0 0.0
    %2395 = vmatprep.subr.mxu0 0.0
    %2396 = vmatpush1.msra.mxu0 0.0
    %2397 = vmatprep.subr.mxu0 0.0
    %2398 = vmatpush1.msra.mxu0 0.0
    %2399 = vmatprep.subr.mxu0 0.0
    %2400 = vmatpush1.msra.mxu0 0.0
    %2401 = vmatprep.subr.mxu0 0.0
    %2402 = vmatpush1.msra.mxu0 0.0
    %2403 = vmatprep.mubr.f32.mxu0 0.0
    %2404 = vmatmul.mubr.f32.gmra.mrb[0].mxu0 %v2337
    %v2405 = vpop.f32.mrb[0].mxu0
    %v2406 = vadd.f32 %v2333, %v2405
    %v2407 = vpop.f32.mrb[0].mxu0
    %2408 = vdwg.mxu0
    %vm2409 = vcmask 91136
    %v2410 = vsel %vm2409, %v2406, -inf
    %2411 = vmax.xlane.f32.xlu0 %v2410
    %v2412 = vpop.xlane.xlu0 %2411
    %v2413 = vsub.f32 %v2406, %v2412
    %v2414 = vmul.f32 %v2413, 1.442695
    %v2415 = vpow.pop %v2414
    %v2416 = vsel %vm2409, %v2415, 0.0
    %2417 = vadd.xlane.f32.xlu0 %v2416
    %v2418 = vpop.xlane.xlu0 %2417
    %v2419 = vrcp.pop %v2418
    %v2420 = vmul.f32 %v2415, %v2419
    %2421 = vst.msk [vmem:[#allocation5] sm:$0x3] %vm2409, %v2420
    %vm2422 = vcmask 58368
    %2423 = vst.msk [vmem:[#allocation6] sm:$0x3] %vm2422, %v2326
    // Predicated region
    $region38: #{speech_res_model_forward.1} parent=1 // pred_check
      _
    $region39: #{speech_res_model_forward.1} parent=1 // pred_check_branch
      %2425 = sbr.rel (0) target = $region41
    $region40: #{speech_res_model_forward.1} parent=1 // pred_region
      %s2427 = ssub.s32 32, 32
      %2428 = vsyncadd [#allocation4], %s2427
      %s2430 = sshll.u32 [#allocation5], 4
      %s2431 = int_to_ptr.vmem [resolvable:$true] %s2430
      %2433 = dma.vmem_to_hbm [thread:$0]  %s2431, 32, %s8, [#allocation4]
    $region41: #{speech_res_model_forward.1} parent=1 // pred_fallthru
      _
    // Predicated region
    $region42: #{speech_res_model_forward.1} parent=1 // pred_check
      _
    $region43: #{speech_res_model_forward.1} parent=1 // pred_check_branch
      %2435 = sbr.rel (0) target = $region45
    $region44: #{speech_res_model_forward.1} parent=1 // pred_region
      %s2437 = ssub.s32 32, 32
      %2438 = vsyncadd [#allocation7], %s2437
      %s2440 = sshll.u32 [#allocation6], 4
      %s2441 = int_to_ptr.vmem [resolvable:$true] %s2440
      %2443 = dma.vmem_to_hbm [thread:$0]  %s2441, 32, %s9, [#allocation7]
    $region45: #{speech_res_model_forward.1} parent=1 // pred_fallthru
      _
    // Predicated region
    $region46: #{speech_res_model_forward.1} parent=1 // pred_check
      _
    $region47: #{speech_res_model_forward.1} parent=1 // pred_check_branch
      %2445 = sbr.rel (0) target = $region49
    $region48: #{speech_res_model_forward.1} parent=1 // pred_region
      %2446 = dma.done [#allocation4], 32
    $region49: #{speech_res_model_forward.1} parent=1 // pred_fallthru
      _
    // Predicated region
    $region50: #{speech_res_model_forward.1} parent=1 // pred_check
      _
    $region51: #{speech_res_model_forward.1} parent=1 // pred_check_branch
      %2448 = sbr.rel (0) target = $region53
    $region52: #{speech_res_model_forward.1} parent=1 // pred_region
      %2449 = dma.done [#allocation7], 32
    $region53: #{speech_res_model_forward.1} parent=1 // pred_fallthru
      _
    %2450 = vsyncpa [#allocation3], 1
    %2451 = vsyncpa [#allocation4], 1
    %2452 = vsyncpa [#allocation7], 1

</llo_original>
